<compile_context>
chip_gen: v6e
topology: v6e:2x2x1
jax: 0.10.0
libtpu: 0.0.40
codegen_flags: <defaults>
</compile_context>

<pallas_src>
import functools

import jax
import jax.numpy as jnp
from jax.experimental import pallas as pl
from jax.experimental.pallas import tpu as pltpu


def _round_up(x, m):
    return (x + m - 1) // m * m


def _node_rnn_kernel(
    # activations (streamed per batch tile)
    xin_ref, h0_ref, c0_ref,
    # fused node_linear + edge_linear (block-diagonal, BN pre-folded) + bias
    w_embed_ref, b_embed_ref,
    # fused LSTMCell weights: input path [W_ih_node; W_ih_edge], recurrent
    # path W_hh, and combined bias b_ih + b_hh
    w_gih_ref, w_ghh_ref, b_gates_ref,
    # output_linear
    w_out_ref, b_out_ref,
    # lane-dense packed output slab: [output | relu(h1) | c1 | zero pad]
    packed_ref,
    *, hidden: int, out_size: int, pack_width: int,
):
    H = hidden
    O = out_size

    # --- relu([node_embed | edge_embed]) in a single MXU pass.
    #     (BatchNorm affine is already folded into w_embed / b_embed.)
    embed = jnp.dot(xin_ref[...], w_embed_ref[...],
                    preferred_element_type=jnp.float32)
    embed = jnp.maximum(embed + b_embed_ref[...], 0.0)

    # --- LSTM gates: input path + recurrent path (two small MXU passes,
    #     no in-kernel concat / relayout), shared bias row.
    gates = (jnp.dot(embed.astype(jnp.bfloat16), w_gih_ref[...],
                     preferred_element_type=jnp.float32)
             + jnp.dot(h0_ref[...].astype(jnp.bfloat16), w_ghh_ref[...],
                       preferred_element_type=jnp.float32)
             + b_gates_ref[...])

    i_g = jax.nn.sigmoid(gates[:, 0 * H:1 * H])
    f_g = jax.nn.sigmoid(gates[:, 1 * H:2 * H])
    g_g = jnp.tanh(gates[:, 2 * H:3 * H])
    o_g = jax.nn.sigmoid(gates[:, 3 * H:4 * H])

    c1 = f_g * c0_ref[...] + i_g * g_g
    h1r = jnp.maximum(o_g * jnp.tanh(c1), 0.0)   # module returns relu(h1)

    # --- output_linear + relu.
    out = jnp.dot(h1r.astype(jnp.bfloat16), w_out_ref[...],
                  preferred_element_type=jnp.float32)
    out = jnp.maximum(out + b_out_ref[...], 0.0)

    # --- pack everything into one lane-dense slab (width = multiple of 128).
    packed_ref[:, 0:O] = out
    packed_ref[:, O:O + H] = h1r
    packed_ref[:, O + H:O + 2 * H] = c1
    if pack_width > O + 2 * H:
        packed_ref[:, O + 2 * H:] = jnp.zeros(
            (packed_ref.shape[0], pack_width - (O + 2 * H)), jnp.float32)


def segment_node_rnn_forward(true_batch_size, node_feature, h_temporal,
                             h_spatial, h0, c0, params, *, tile_b=128,
                             eps=1e-5):
    """Pallas implementation of SegmentNodeRNN.forward.

    Returns (output, h1, c1) exactly like the PyTorch module (h1 is the
    post-ReLU hidden state, c1 the raw cell state).
    """
    B, F = node_feature.shape
    T = h_temporal.shape[-1]
    S = h_spatial.shape[-1]
    En = params["w_node"].shape[1]
    Ee = params["w_edge_t"].shape[1]
    H = params["w_hh"].shape[0]
    O = params["w_out"].shape[1]
    Fin = F + T + S

    if h0 is None and c0 is None:
        h0 = jnp.zeros((B, H), jnp.float32)
        c0 = jnp.zeros((B, H), jnp.float32)

    # --- BatchNorm1d (training-mode batch stats, biased variance) computed
    #     over the full (real) batch here, then folded INTO the node_linear
    #     block of the fused embedding matmul -> zero BN work in the kernel
    #     and batch tiling cannot change the statistics.
    if true_batch_size > 1:  # static Python condition, as in torch
        mean = jnp.mean(node_feature, axis=0, keepdims=True)
        var = jnp.mean(jnp.square(node_feature - mean), axis=0, keepdims=True)
        scale = params["bn_gamma"] * jax.lax.rsqrt(var + eps)    # (1, F)
        shift = params["bn_beta"] - mean * scale                 # (1, F)
        w_node_eff = params["w_node"] * scale[0][:, None]        # (F, En)
        b_node_eff = params["b_node"] + shift @ params["w_node"]  # (1, En)
    else:
        w_node_eff = params["w_node"]
        b_node_eff = params["b_node"]

    # --- fused weight packing (host/wrapper-side; tiny). ---
    # node_linear + edge_linear as one block-diagonal matrix on [x | ht | hs].
    w_embed = jnp.zeros((Fin, En + Ee), jnp.float32)
    w_embed = w_embed.at[:F, :En].set(w_node_eff)
    w_embed = w_embed.at[F:F + T, En:].set(params["w_edge_t"])
    w_embed = w_embed.at[F + T:, En:].set(params["w_edge_s"])
    b_embed = jnp.concatenate([b_node_eff, params["b_edge"]], axis=-1)
    # LSTMCell: input-path weights fused, recurrent path separate; one bias.
    w_gih = jnp.concatenate([params["w_ih_n"], params["w_ih_e"]], axis=0)
    w_ghh = params["w_hh"]
    b_gates = params["b_ih"] + params["b_hh"]

    w_embed = w_embed.astype(jnp.bfloat16)
    w_gih = w_gih.astype(jnp.bfloat16)
    w_ghh = w_ghh.astype(jnp.bfloat16)
    w_out = params["w_out"].astype(jnp.bfloat16)
    b_out = params["b_out"]

    # --- wrapper-side input slab (bf16: half the streaming HBM traffic; it
    #     would be cast before the MXU anyway). No in-kernel concat needed.
    xin = jnp.concatenate(
        [node_feature, h_temporal, h_spatial], axis=-1).astype(jnp.bfloat16)

    # --- batch tiling over the grid. ---
    TILE_B = min(tile_b, _round_up(B, 8))
    B_pad = _round_up(B, TILE_B)
    if B_pad != B:
        pad = ((0, B_pad - B), (0, 0))
        xin = jnp.pad(xin, pad)
        h0 = jnp.pad(h0, pad)
        c0 = jnp.pad(c0, pad)
    num_tiles = B_pad // TILE_B

    PACK = _round_up(O + 2 * H, 128)   # lane-dense packed output width

    kernel = functools.partial(
        _node_rnn_kernel, hidden=H, out_size=O, pack_width=PACK)

    def act_spec(width):
        return pl.BlockSpec((TILE_B, width), lambda i: (i, 0))

    def const_spec(a):
        return pl.BlockSpec(a.shape, lambda i: (0,) * a.ndim)

    packed = pl.pallas_call(
        kernel,
        out_shape=jax.ShapeDtypeStruct((B_pad, PACK), jnp.float32),
        grid=(num_tiles,),
        in_specs=[
            act_spec(Fin), act_spec(H), act_spec(H),
            const_spec(w_embed), const_spec(b_embed),
            const_spec(w_gih), const_spec(w_ghh), const_spec(b_gates),
            const_spec(w_out), const_spec(b_out),
        ],
        out_specs=pl.BlockSpec((TILE_B, PACK), lambda i: (i, 0)),
        compiler_params=pltpu.CompilerParams(
            dimension_semantics=("parallel",)),
    )(xin, h0, c0, w_embed, b_embed, w_gih, w_ghh, b_gates, w_out, b_out)

    output = packed[:B, 0:O]
    h1 = packed[:B, O:O + H]
    c1 = packed[:B, O + H:O + 2 * H]
    return output, h1, c1


def init_params(key, F, T, S, En, Ee, H, O):
    """Deterministic synthetic parameters (shapes match the torch module)."""
    ks = jax.random.split(key, 12)
    u = lambda k, shape, scale: (
        (jax.random.uniform(k, shape, jnp.float32) - 0.5) * 2.0 * scale)
    return {
        # BatchNorm1d(node_feature_size) affine params (training-mode stats).
        "bn_gamma": jnp.ones((1, F), jnp.float32),
        "bn_beta": jnp.zeros((1, F), jnp.float32),
        # node_linear: Linear(F, En), stored as [F, En] = W.T
        "w_node": u(ks[0], (F, En), 1.0 / jnp.sqrt(F)),
        "b_node": u(ks[1], (1, En), 1.0 / jnp.sqrt(F)),
        # edge_linear: Linear(T + S, Ee), split along the input concat axis
        "w_edge_t": u(ks[2], (T, Ee), 1.0 / jnp.sqrt(T + S)),
        "w_edge_s": u(ks[3], (S, Ee), 1.0 / jnp.sqrt(T + S)),
        "b_edge": u(ks[4], (1, Ee), 1.0 / jnp.sqrt(T + S)),
        # LSTMCell(En + Ee, H): W_ih [4H, En+Ee] -> split & transposed
        "w_ih_n": u(ks[5], (En, 4 * H), 1.0 / jnp.sqrt(H)),
        "w_ih_e": u(ks[6], (Ee, 4 * H), 1.0 / jnp.sqrt(H)),
        "b_ih": u(ks[7], (1, 4 * H), 1.0 / jnp.sqrt(H)),
        "w_hh": u(ks[8], (H, 4 * H), 1.0 / jnp.sqrt(H)),
        "b_hh": u(ks[9], (1, 4 * H), 1.0 / jnp.sqrt(H)),
        # output_linear: Linear(H, O)
        "w_out": u(ks[10], (H, O), 1.0 / jnp.sqrt(H)),
        "b_out": u(ks[11], (1, O), 1.0 / jnp.sqrt(H)),
    }


def _reference_forward(true_batch_size, x, ht, hs, h0, c0, p, eps=1e-5):
    """Pure-JAX f32 reference matching the PyTorch module."""
    if true_batch_size > 1:
        mean = jnp.mean(x, axis=0, keepdims=True)
        var = jnp.mean(jnp.square(x - mean), axis=0, keepdims=True)
        x = (x - mean) * jax.lax.rsqrt(var + eps)
        x = x * p["bn_gamma"] + p["bn_beta"]
    ne = jax.nn.relu(x @ p["w_node"] + p["b_node"])
    ee = jax.nn.relu(ht @ p["w_edge_t"] + hs @ p["w_edge_s"] + p["b_edge"])
    gates = (ne @ p["w_ih_n"] + ee @ p["w_ih_e"] + p["b_ih"]
             + h0 @ p["w_hh"] + p["b_hh"])
    H = p["w_hh"].shape[0]
    i_g = jax.nn.sigmoid(gates[:, 0 * H:1 * H])
    f_g = jax.nn.sigmoid(gates[:, 1 * H:2 * H])
    g_g = jnp.tanh(gates[:, 2 * H:3 * H])
    o_g = jax.nn.sigmoid(gates[:, 3 * H:4 * H])
    c1 = f_g * c0 + i_g * g_g
    h1 = jax.nn.relu(o_g * jnp.tanh(c1))
    out = jax.nn.relu(h1 @ p["w_out"] + p["b_out"])
    return out, h1, c1


if __name__ == "__main__":
    # 256 rows -> two 128-row "parallel" grid steps so the matmul M dimension
    # fills sublanes and (on v7x) both TensorCores get a batch tile.
    B = 256                  # batch (true_batch_size > 1 -> BatchNorm applied)
    F = 16                   # current_node_feature_size
    T = 8                    # edge_hidden_size_temporal
    S = 8                    # edge_weighted_hidden_size_spatial
    En = 32                  # node_embedding_size
    Ee = 32                  # edge_embedding_size
    H = 32                   # node_hidden_size
    O = 16                   # node_output_size

    key = jax.random.PRNGKey(0)
    k_in, k_par = jax.random.split(key)
    ki = jax.random.split(k_in, 5)

    node_feature = jax.random.normal(ki[0], (B, F), jnp.float32)
    h_temporal = jax.random.normal(ki[1], (B, T), jnp.float32)
    h_spatial = jax.random.normal(ki[2], (B, S), jnp.float32)
    h0 = jax.random.normal(ki[3], (B, H), jnp.float32) * 0.1
    c0 = jax.random.normal(ki[4], (B, H), jnp.float32) * 0.1

    params = init_params(k_par, F, T, S, En, Ee, H, O)

    output, h1, c1 = segment_node_rnn_forward(
        true_batch_size=B,
        node_feature=node_feature,
        h_temporal=h_temporal,
        h_spatial=h_spatial,
        h0=h0,
        c0=c0,
        params=params,
    )
    jax.block_until_ready((output, h1, c1))

    assert output.shape == (B, O) and h1.shape == (B, H) and c1.shape == (B, H)

    # Loose check vs. a pure-JAX f32 reference (kernel matmuls are bf16).
    ref_out, ref_h1, ref_c1 = _reference_forward(
        B, node_feature, h_temporal, h_spatial, h0, c0, params)
    for got, ref in ((output, ref_out), (h1, ref_h1), (c1, ref_c1)):
        err = float(jnp.max(jnp.abs(got - ref)))
        assert err < 5e-2, f"max abs error too large: {err}"

    print("KERNEL_OK")
</pallas_src>

<mosaic_0001>
module attributes {stable_mosaic.version = 11 : i64} {
  func.func @_node_rnn_kernel(%arg0: i32, %arg1: memref<128x32xbf16, #tpu.memory_space<vmem>>, %arg2: memref<128x32xf32, #tpu.memory_space<vmem>>, %arg3: memref<128x32xf32, #tpu.memory_space<vmem>>, %arg4: memref<32x64xbf16, #tpu.memory_space<vmem>>, %arg5: memref<1x64xf32, #tpu.memory_space<vmem>>, %arg6: memref<64x128xbf16, #tpu.memory_space<vmem>>, %arg7: memref<32x128xbf16, #tpu.memory_space<vmem>>, %arg8: memref<1x128xf32, #tpu.memory_space<vmem>>, %arg9: memref<32x16xbf16, #tpu.memory_space<vmem>>, %arg10: memref<1x16xf32, #tpu.memory_space<vmem>>, %arg11: memref<128x128xf32, #tpu.memory_space<vmem>>) attributes {dimension_semantics = [#tpu.dimension_semantics<parallel>], iteration_bounds = array<i64: 2>, scalar_prefetch = 0 : i64, scratch_operands = 0 : i64, tpu.core_type = #tpu.core_type<tc>, window_params = [{transform_indices = @transform_0, window_bounds = array<i64: 128, 32>}, {transform_indices = @transform_1, window_bounds = array<i64: 128, 32>}, {transform_indices = @transform_2, window_bounds = array<i64: 128, 32>}, {pipeline_mode = #tpu.pipeline_mode<synchronous>, transform_indices = @transform_3, window_bounds = array<i64: 32, 64>}, {pipeline_mode = #tpu.pipeline_mode<synchronous>, transform_indices = @transform_4, window_bounds = array<i64: 1, 64>}, {pipeline_mode = #tpu.pipeline_mode<synchronous>, transform_indices = @transform_5, window_bounds = array<i64: 64, 128>}, {pipeline_mode = #tpu.pipeline_mode<synchronous>, transform_indices = @transform_6, window_bounds = array<i64: 32, 128>}, {pipeline_mode = #tpu.pipeline_mode<synchronous>, transform_indices = @transform_7, window_bounds = array<i64: 1, 128>}, {pipeline_mode = #tpu.pipeline_mode<synchronous>, transform_indices = @transform_8, window_bounds = array<i64: 32, 16>}, {pipeline_mode = #tpu.pipeline_mode<synchronous>, transform_indices = @transform_9, window_bounds = array<i64: 1, 16>}, {transform_indices = @transform_10, window_bounds = array<i64: 128, 128>}]} {
    %c0 = arith.constant 0 : index
    %c0_0 = arith.constant 0 : index
    %0 = vector.load %arg1[%c0, %c0_0] : memref<128x32xbf16, #tpu.memory_space<vmem>>, vector<128x32xbf16>
    %c0_1 = arith.constant 0 : index
    %c0_2 = arith.constant 0 : index
    %1 = vector.load %arg4[%c0_1, %c0_2] : memref<32x64xbf16, #tpu.memory_space<vmem>>, vector<32x64xbf16>
    %cst = arith.constant dense<0.000000e+00> : vector<128x64xf32>
    %2 = tpu.matmul %0, %1, %cst {dimension_numbers = #tpu.dot_dimension_numbers<[1], [0], [0], [1], [0, 0, 1, 1], [], []>} : vector<128x32xbf16>, vector<32x64xbf16>, vector<128x64xf32> -> vector<128x64xf32>
    %c0_3 = arith.constant 0 : index
    %c0_4 = arith.constant 0 : index
    %3 = vector.load %arg5[%c0_3, %c0_4] : memref<1x64xf32, #tpu.memory_space<vmem>>, vector<1x64xf32>
    %4 = vector.broadcast %3 : vector<1x64xf32> to vector<128x64xf32>
    %5 = arith.addf %2, %4 : vector<128x64xf32>
    %cst_5 = arith.constant 0.000000e+00 : f32
    %6 = vector.broadcast %cst_5 : f32 to vector<128x64xf32>
    %7 = arith.maximumf %5, %6 : vector<128x64xf32>
    %8 = arith.truncf %7 : vector<128x64xf32> to vector<128x64xbf16>
    %c0_6 = arith.constant 0 : index
    %c0_7 = arith.constant 0 : index
    %9 = vector.load %arg6[%c0_6, %c0_7] : memref<64x128xbf16, #tpu.memory_space<vmem>>, vector<64x128xbf16>
    %cst_8 = arith.constant dense<0.000000e+00> : vector<128x128xf32>
    %10 = tpu.matmul %8, %9, %cst_8 {dimension_numbers = #tpu.dot_dimension_numbers<[1], [0], [0], [1], [0, 0, 1, 1], [], []>} : vector<128x64xbf16>, vector<64x128xbf16>, vector<128x128xf32> -> vector<128x128xf32>
    %c0_9 = arith.constant 0 : index
    %c0_10 = arith.constant 0 : index
    %11 = vector.load %arg2[%c0_9, %c0_10] : memref<128x32xf32, #tpu.memory_space<vmem>>, vector<128x32xf32>
    %12 = arith.truncf %11 : vector<128x32xf32> to vector<128x32xbf16>
    %c0_11 = arith.constant 0 : index
    %c0_12 = arith.constant 0 : index
    %13 = vector.load %arg7[%c0_11, %c0_12] : memref<32x128xbf16, #tpu.memory_space<vmem>>, vector<32x128xbf16>
    %cst_13 = arith.constant dense<0.000000e+00> : vector<128x128xf32>
    %14 = tpu.matmul %12, %13, %cst_13 {dimension_numbers = #tpu.dot_dimension_numbers<[1], [0], [0], [1], [0, 0, 1, 1], [], []>} : vector<128x32xbf16>, vector<32x128xbf16>, vector<128x128xf32> -> vector<128x128xf32>
    %15 = arith.addf %10, %14 : vector<128x128xf32>
    %c0_14 = arith.constant 0 : index
    %c0_15 = arith.constant 0 : index
    %16 = vector.load %arg8[%c0_14, %c0_15] : memref<1x128xf32, #tpu.memory_space<vmem>>, vector<1x128xf32>
    %17 = vector.broadcast %16 : vector<1x128xf32> to vector<128x128xf32>
    %18 = arith.addf %15, %17 : vector<128x128xf32>
    %19 = vector.extract_strided_slice %18 {offsets = [0, 0], sizes = [128, 32], strides = [1, 1]} : vector<128x128xf32> to vector<128x32xf32>
    %20 = arith.negf %19 : vector<128x32xf32>
    %21 = math.exp %20 : vector<128x32xf32>
    %cst_16 = arith.constant 1.000000e+00 : f32
    %22 = vector.broadcast %cst_16 : f32 to vector<128x32xf32>
    %23 = arith.addf %22, %21 : vector<128x32xf32>
    %24 = arith.divf %22, %23 : vector<128x32xf32>
    %25 = vector.extract_strided_slice %18 {offsets = [0, 32], sizes = [128, 32], strides = [1, 1]} : vector<128x128xf32> to vector<128x32xf32>
    %26 = arith.negf %25 : vector<128x32xf32>
    %27 = math.exp %26 : vector<128x32xf32>
    %cst_17 = arith.constant 1.000000e+00 : f32
    %28 = vector.broadcast %cst_17 : f32 to vector<128x32xf32>
    %29 = arith.addf %28, %27 : vector<128x32xf32>
    %30 = arith.divf %28, %29 : vector<128x32xf32>
    %31 = vector.extract_strided_slice %18 {offsets = [0, 64], sizes = [128, 32], strides = [1, 1]} : vector<128x128xf32> to vector<128x32xf32>
    %32 = math.tanh %31 : vector<128x32xf32>
    %33 = vector.extract_strided_slice %18 {offsets = [0, 96], sizes = [128, 32], strides = [1, 1]} : vector<128x128xf32> to vector<128x32xf32>
    %34 = arith.negf %33 : vector<128x32xf32>
    %35 = math.exp %34 : vector<128x32xf32>
    %cst_18 = arith.constant 1.000000e+00 : f32
    %36 = vector.broadcast %cst_18 : f32 to vector<128x32xf32>
    %37 = arith.addf %36, %35 : vector<128x32xf32>
    %38 = arith.divf %36, %37 : vector<128x32xf32>
    %c0_19 = arith.constant 0 : index
    %c0_20 = arith.constant 0 : index
    %39 = vector.load %arg3[%c0_19, %c0_20] : memref<128x32xf32, #tpu.memory_space<vmem>>, vector<128x32xf32>
    %40 = arith.mulf %30, %39 : vector<128x32xf32>
    %41 = arith.mulf %24, %32 : vector<128x32xf32>
    %42 = arith.addf %40, %41 : vector<128x32xf32>
    %43 = math.tanh %42 : vector<128x32xf32>
    %44 = arith.mulf %38, %43 : vector<128x32xf32>
    %cst_21 = arith.constant 0.000000e+00 : f32
    %45 = vector.broadcast %cst_21 : f32 to vector<128x32xf32>
    %46 = arith.maximumf %44, %45 : vector<128x32xf32>
    %47 = arith.truncf %46 : vector<128x32xf32> to vector<128x32xbf16>
    %c0_22 = arith.constant 0 : index
    %c0_23 = arith.constant 0 : index
    %48 = vector.load %arg9[%c0_22, %c0_23] : memref<32x16xbf16, #tpu.memory_space<vmem>>, vector<32x16xbf16>
    %cst_24 = arith.constant dense<0.000000e+00> : vector<128x16xf32>
    %49 = tpu.matmul %47, %48, %cst_24 {dimension_numbers = #tpu.dot_dimension_numbers<[1], [0], [0], [1], [0, 0, 1, 1], [], []>} : vector<128x32xbf16>, vector<32x16xbf16>, vector<128x16xf32> -> vector<128x16xf32>
    %c0_25 = arith.constant 0 : index
    %c0_26 = arith.constant 0 : index
    %50 = vector.load %arg10[%c0_25, %c0_26] : memref<1x16xf32, #tpu.memory_space<vmem>>, vector<1x16xf32>
    %51 = vector.broadcast %50 : vector<1x16xf32> to vector<128x16xf32>
    %52 = arith.addf %49, %51 : vector<128x16xf32>
    %cst_27 = arith.constant 0.000000e+00 : f32
    %53 = vector.broadcast %cst_27 : f32 to vector<128x16xf32>
    %54 = arith.maximumf %52, %53 : vector<128x16xf32>
    %c0_28 = arith.constant 0 : index
    %c0_29 = arith.constant 0 : index
    %55 = vector.load %arg11[%c0_28, %c0_29] : memref<128x128xf32, #tpu.memory_space<vmem>>, vector<128x16xf32>
    tpu.vector_store %arg11[%c0_28, %c0_29], %54 {strides = array<i32>} : memref<128x128xf32, #tpu.memory_space<vmem>>, vector<128x16xf32>,
    %c0_30 = arith.constant 0 : index
    %c16 = arith.constant 16 : index
    %56 = vector.load %arg11[%c0_30, %c16] : memref<128x128xf32, #tpu.memory_space<vmem>>, vector<128x32xf32>
    tpu.vector_store %arg11[%c0_30, %c16], %46 {strides = array<i32>} : memref<128x128xf32, #tpu.memory_space<vmem>>, vector<128x32xf32>,
    %c0_31 = arith.constant 0 : index
    %c48 = arith.constant 48 : index
    %57 = vector.load %arg11[%c0_31, %c48] : memref<128x128xf32, #tpu.memory_space<vmem>>, vector<128x32xf32>
    tpu.vector_store %arg11[%c0_31, %c48], %42 {strides = array<i32>} : memref<128x128xf32, #tpu.memory_space<vmem>>, vector<128x32xf32>,
    %cst_32 = arith.constant 0.000000e+00 : f32
    %58 = vector.broadcast %cst_32 : f32 to vector<128x48xf32>
    %c0_33 = arith.constant 0 : index
    %c80 = arith.constant 80 : index
    %59 = vector.load %arg11[%c0_33, %c80] : memref<128x128xf32, #tpu.memory_space<vmem>>, vector<128x48xf32>
    tpu.vector_store %arg11[%c0_33, %c80], %58 {strides = array<i32>} : memref<128x128xf32, #tpu.memory_space<vmem>>, vector<128x48xf32>,
    return
  }
  func.func @transform_0(%arg0: i32) -> (i32, i32) {
    %c0_i32 = arith.constant 0 : i32
    %c0_i32_0 = arith.constant 0 : i32
    return %arg0, %c0_i32 : i32, i32
  }
  func.func @transform_1(%arg0: i32) -> (i32, i32) {
    %c0_i32 = arith.constant 0 : i32
    %c0_i32_0 = arith.constant 0 : i32
    return %arg0, %c0_i32 : i32, i32
  }
  func.func @transform_2(%arg0: i32) -> (i32, i32) {
    %c0_i32 = arith.constant 0 : i32
    %c0_i32_0 = arith.constant 0 : i32
    return %arg0, %c0_i32 : i32, i32
  }
  func.func @transform_3(%arg0: i32) -> (i32, i32) {
    %c0_i32 = arith.constant 0 : i32
    %c0_i32_0 = arith.constant 0 : i32
    %c0_i32_1 = arith.constant 0 : i32
    return %c0_i32, %c0_i32_0 : i32, i32
  }
  func.func @transform_4(%arg0: i32) -> (i32, i32) {
    %c0_i32 = arith.constant 0 : i32
    %c0_i32_0 = arith.constant 0 : i32
    %c0_i32_1 = arith.constant 0 : i32
    return %c0_i32, %c0_i32_0 : i32, i32
  }
  func.func @transform_5(%arg0: i32) -> (i32, i32) {
    %c0_i32 = arith.constant 0 : i32
    %c0_i32_0 = arith.constant 0 : i32
    %c0_i32_1 = arith.constant 0 : i32
    return %c0_i32, %c0_i32_0 : i32, i32
  }
  func.func @transform_6(%arg0: i32) -> (i32, i32) {
    %c0_i32 = arith.constant 0 : i32
    %c0_i32_0 = arith.constant 0 : i32
    %c0_i32_1 = arith.constant 0 : i32
    return %c0_i32, %c0_i32_0 : i32, i32
  }
  func.func @transform_7(%arg0: i32) -> (i32, i32) {
    %c0_i32 = arith.constant 0 : i32
    %c0_i32_0 = arith.constant 0 : i32
    %c0_i32_1 = arith.constant 0 : i32
    return %c0_i32, %c0_i32_0 : i32, i32
  }
  func.func @transform_8(%arg0: i32) -> (i32, i32) {
    %c0_i32 = arith.constant 0 : i32
    %c0_i32_0 = arith.constant 0 : i32
    %c0_i32_1 = arith.constant 0 : i32
    return %c0_i32, %c0_i32_0 : i32, i32
  }
  func.func @transform_9(%arg0: i32) -> (i32, i32) {
    %c0_i32 = arith.constant 0 : i32
    %c0_i32_0 = arith.constant 0 : i32
    %c0_i32_1 = arith.constant 0 : i32
    return %c0_i32, %c0_i32_0 : i32, i32
  }
  func.func @transform_10(%arg0: i32) -> (i32, i32) {
    %c0_i32 = arith.constant 0 : i32
    %c0_i32_0 = arith.constant 0 : i32
    return %arg0, %c0_i32 : i32, i32
  }
}

</mosaic_0001>

<llo_original>
// kernel: tpu_custom_call.1
$region0: #{tpu_custom_call.1}
  #allocation0 [shape = 'u32[]', space=smem, size = 0x4, offset = 0x4, fixed_abs, tag = 'smem constant byte address 0x4 - core index']
  #allocation1 [shape = 'u32[144,128]{1,0:T(1,128)}', space=vmem, size = 0x12000, scoped, tag = 'internal scratch']
  %s0 = inlined_call_operand.vmem [shape: bf16[256,32], index: 0, kind: input, shape index: {}]
  %s1 = inlined_call_operand.vmem [shape: f32[256,32], index: 1, kind: input, shape index: {}]
  %s2 = inlined_call_operand.vmem [shape: f32[256,32], index: 2, kind: input, shape index: {}]
  %s3 = inlined_call_operand.vmem [shape: bf16[32,64], index: 3, kind: input, shape index: {}]
  %s4 = inlined_call_operand.vmem [shape: f32[1,64], index: 4, kind: input, shape index: {}]
  %s5 = inlined_call_operand.vmem [shape: bf16[64,128], index: 5, kind: input, shape index: {}]
  %s6 = inlined_call_operand.vmem [shape: bf16[32,128], index: 6, kind: input, shape index: {}]
  %s7 = inlined_call_operand.vmem [shape: f32[1,128], index: 7, kind: input, shape index: {}]
  %s8 = inlined_call_operand.vmem [shape: bf16[32,16], index: 8, kind: input, shape index: {}]
  %s9 = inlined_call_operand.vmem [shape: f32[1,16], index: 9, kind: input, shape index: {}]
  %s10 = inlined_call_operand.hbm [shape: f32[256,128], index: 10, kind: output, shape index: {}]
  %s11 = sld [smem:[#allocation0]]
  $region73: #{tpu_custom_call.1} parent=0
    _
  %s13 = ssub.s32 1, %s11
  %s14 = scalar_select 0, %s13, %s11
  $region1: #{tpu_custom_call.1} parent=0
    #allocation2 [shape = 'u8[131072]{0}', space=vmem, size = 0x20000, scoped, tag = 'output window, operand 0']
    #allocation3 [shape = 's32[2]{0}', space=sflag, size = 0x8, scoped, tag = 'scoped memory for tpu_custom_call.1']
    %15 = vsyncpa [#allocation3], 0
    %s16 = scalar_lea.sflag [#allocation3], 1
    %17 = vsyncpa %s16, 0
    loop: start=0, step=1, limit=4
    $region2: #{tpu_custom_call.1} parent=1 // loop_pre_header
      _
    $region3: #{tpu_custom_call.1} parent=1 // loop_header
      %s19 = sphi 0, %s23
      %p20 = scmp.ge.s32.totalorder %s19, 4
      %s29 = sphi 0, %s31
      %s32 = sphi 0, %s29
      %s33 = sphi 0, %s32
      %s49 = sphi 0, %s33
      %s55 = sphi 0, %s57
      %s58 = sphi 0, %s55
      %s59 = sphi 0, %s58
      %s75 = sphi 0, %s59
      %s81 = sphi 0, %s83
      %s84 = sphi 0, %s81
      %s85 = sphi 0, %s84
      %s101 = sphi 0, %s85
      %s105 = sphi 0, %s105
      %s107 = sphi 0, %s105
      %s108 = sphi 0, %s107
      %s122 = sphi 0, %s108
      %s126 = sphi 0, %s126
      %s128 = sphi 0, %s126
      %s129 = sphi 0, %s128
      %s143 = sphi 0, %s129
      %s147 = sphi 0, %s147
      %s149 = sphi 0, %s147
      %s150 = sphi 0, %s149
      %s164 = sphi 0, %s150
      %s168 = sphi 0, %s168
      %s170 = sphi 0, %s168
      %s171 = sphi 0, %s170
      %s185 = sphi 0, %s171
      %s189 = sphi 0, %s189
      %s191 = sphi 0, %s189
      %s192 = sphi 0, %s191
      %s206 = sphi 0, %s192
      %s210 = sphi 0, %s210
      %s212 = sphi 0, %s210
      %s213 = sphi 0, %s212
      %s227 = sphi 0, %s213
      %s231 = sphi 0, %s231
      %s233 = sphi 0, %s231
      %s234 = sphi 0, %s233
      %s248 = sphi 0, %s234
      %s254 = sphi 0, %s256
      %s257 = sphi 0, %s254
      %s258 = sphi 0, %s257
      %s274 = sphi 0, %s258
    $region4: #{tpu_custom_call.1} parent=1 // loop_header_branch
      %22 = sbr.rel (%p20) target = $region8
    $region5: #{tpu_custom_call.1} parent=1 // loop_body
      %s24 = ssub.s32 %s19, 1
      %s25 = ssub.s32 %s19, 2
      %s26 = sadd.s32 %s19, 1
      %s27 = ssub.s32 %s19, %s26
      %p28 = scmp.eq.s32.totalorder %s27, 0
      %s30 = sadd.s32 %s29, 1
      %s31 = scalar_select %p28, %s29, %s30
      %p34 = pneg %p28
      %p35 = scmp.eq.s32.totalorder %s19, 1
      %p36 = por %p34, %p35
      %p37 = scmp.ne.s32.totalorder %s29, %s32
      %p38 = scmp.eq.s32.totalorder %s19, 0
      %p39 = por %p37, %p38
      %p40 = scmp.ne.s32.totalorder %s29, %s32
      %p41 = scmp.eq.s32.totalorder %s24, 1
      %p42 = por %p40, %p41
      %p43 = scmp.ne.s32.totalorder %s32, %s33
      %p44 = scmp.eq.s32.totalorder %s24, 0
      %p45 = por %p43, %p44
      %p46 = scmp.ne.s32.totalorder %s32, %s33
      %p47 = scmp.eq.s32.totalorder %s25, 1
      %p48 = por %p46, %p47
      %p50 = scmp.ne.s32.totalorder %s33, %s49
      %p51 = scmp.eq.s32.totalorder %s25, 0
      %p52 = por %p50, %p51
      %s53 = ssub.s32 %s19, %s26
      %p54 = scmp.eq.s32.totalorder %s53, 0
      %s56 = sadd.s32 %s55, 1
      %s57 = scalar_select %p54, %s55, %s56
      %p60 = pneg %p54
      %p61 = scmp.eq.s32.totalorder %s19, 1
      %p62 = por %p60, %p61
      %p63 = scmp.ne.s32.totalorder %s55, %s58
      %p64 = scmp.eq.s32.totalorder %s19, 0
      %p65 = por %p63, %p64
      %p66 = scmp.ne.s32.totalorder %s55, %s58
      %p67 = scmp.eq.s32.totalorder %s24, 1
      %p68 = por %p66, %p67
      %p69 = scmp.ne.s32.totalorder %s58, %s59
      %p70 = scmp.eq.s32.totalorder %s24, 0
      %p71 = por %p69, %p70
      %p72 = scmp.ne.s32.totalorder %s58, %s59
      %p73 = scmp.eq.s32.totalorder %s25, 1
      %p74 = por %p72, %p73
      %p76 = scmp.ne.s32.totalorder %s59, %s75
      %p77 = scmp.eq.s32.totalorder %s25, 0
      %p78 = por %p76, %p77
      %s79 = ssub.s32 %s19, %s26
      %p80 = scmp.eq.s32.totalorder %s79, 0
      %s82 = sadd.s32 %s81, 1
      %s83 = scalar_select %p80, %s81, %s82
      %p86 = pneg %p80
      %p87 = scmp.eq.s32.totalorder %s19, 1
      %p88 = por %p86, %p87
      %p89 = scmp.ne.s32.totalorder %s81, %s84
      %p90 = scmp.eq.s32.totalorder %s19, 0
      %p91 = por %p89, %p90
      %p92 = scmp.ne.s32.totalorder %s81, %s84
      %p93 = scmp.eq.s32.totalorder %s24, 1
      %p94 = por %p92, %p93
      %p95 = scmp.ne.s32.totalorder %s84, %s85
      %p96 = scmp.eq.s32.totalorder %s24, 0
      %p97 = por %p95, %p96
      %p98 = scmp.ne.s32.totalorder %s84, %s85
      %p99 = scmp.eq.s32.totalorder %s25, 1
      %p100 = por %p98, %p99
      %p102 = scmp.ne.s32.totalorder %s85, %s101
      %p103 = scmp.eq.s32.totalorder %s25, 0
      %p104 = por %p102, %p103
      %s106 = sadd.s32 %s105, 1
      %p109 = scmp.eq.s32.totalorder %s19, 1
      %p110 = scmp.ne.s32.totalorder %s105, %s107
      %p111 = scmp.eq.s32.totalorder %s19, 0
      %p112 = por %p110, %p111
      %p113 = scmp.ne.s32.totalorder %s105, %s107
      %p114 = scmp.eq.s32.totalorder %s24, 1
      %p115 = por %p113, %p114
      %p116 = scmp.ne.s32.totalorder %s107, %s108
      %p117 = scmp.eq.s32.totalorder %s24, 0
      %p118 = por %p116, %p117
      %p119 = scmp.ne.s32.totalorder %s107, %s108
      %p120 = scmp.eq.s32.totalorder %s25, 1
      %p121 = por %p119, %p120
      %p123 = scmp.ne.s32.totalorder %s108, %s122
      %p124 = scmp.eq.s32.totalorder %s25, 0
      %p125 = por %p123, %p124
      %s127 = sadd.s32 %s126, 1
      %p130 = scmp.eq.s32.totalorder %s19, 1
      %p131 = scmp.ne.s32.totalorder %s126, %s128
      %p132 = scmp.eq.s32.totalorder %s19, 0
      %p133 = por %p131, %p132
      %p134 = scmp.ne.s32.totalorder %s126, %s128
      %p135 = scmp.eq.s32.totalorder %s24, 1
      %p136 = por %p134, %p135
      %p137 = scmp.ne.s32.totalorder %s128, %s129
      %p138 = scmp.eq.s32.totalorder %s24, 0
      %p139 = por %p137, %p138
      %p140 = scmp.ne.s32.totalorder %s128, %s129
      %p141 = scmp.eq.s32.totalorder %s25, 1
      %p142 = por %p140, %p141
      %p144 = scmp.ne.s32.totalorder %s129, %s143
      %p145 = scmp.eq.s32.totalorder %s25, 0
      %p146 = por %p144, %p145
      %s148 = sadd.s32 %s147, 1
      %p151 = scmp.eq.s32.totalorder %s19, 1
      %p152 = scmp.ne.s32.totalorder %s147, %s149
      %p153 = scmp.eq.s32.totalorder %s19, 0
      %p154 = por %p152, %p153
      %p155 = scmp.ne.s32.totalorder %s147, %s149
      %p156 = scmp.eq.s32.totalorder %s24, 1
      %p157 = por %p155, %p156
      %p158 = scmp.ne.s32.totalorder %s149, %s150
      %p159 = scmp.eq.s32.totalorder %s24, 0
      %p160 = por %p158, %p159
      %p161 = scmp.ne.s32.totalorder %s149, %s150
      %p162 = scmp.eq.s32.totalorder %s25, 1
      %p163 = por %p161, %p162
      %p165 = scmp.ne.s32.totalorder %s150, %s164
      %p166 = scmp.eq.s32.totalorder %s25, 0
      %p167 = por %p165, %p166
      %s169 = sadd.s32 %s168, 1
      %p172 = scmp.eq.s32.totalorder %s19, 1
      %p173 = scmp.ne.s32.totalorder %s168, %s170
      %p174 = scmp.eq.s32.totalorder %s19, 0
      %p175 = por %p173, %p174
      %p176 = scmp.ne.s32.totalorder %s168, %s170
      %p177 = scmp.eq.s32.totalorder %s24, 1
      %p178 = por %p176, %p177
      %p179 = scmp.ne.s32.totalorder %s170, %s171
      %p180 = scmp.eq.s32.totalorder %s24, 0
      %p181 = por %p179, %p180
      %p182 = scmp.ne.s32.totalorder %s170, %s171
      %p183 = scmp.eq.s32.totalorder %s25, 1
      %p184 = por %p182, %p183
      %p186 = scmp.ne.s32.totalorder %s171, %s185
      %p187 = scmp.eq.s32.totalorder %s25, 0
      %p188 = por %p186, %p187
      %s190 = sadd.s32 %s189, 1
      %p193 = scmp.eq.s32.totalorder %s19, 1
      %p194 = scmp.ne.s32.totalorder %s189, %s191
      %p195 = scmp.eq.s32.totalorder %s19, 0
      %p196 = por %p194, %p195
      %p197 = scmp.ne.s32.totalorder %s189, %s191
      %p198 = scmp.eq.s32.totalorder %s24, 1
      %p199 = por %p197, %p198
      %p200 = scmp.ne.s32.totalorder %s191, %s192
      %p201 = scmp.eq.s32.totalorder %s24, 0
      %p202 = por %p200, %p201
      %p203 = scmp.ne.s32.totalorder %s191, %s192
      %p204 = scmp.eq.s32.totalorder %s25, 1
      %p205 = por %p203, %p204
      %p207 = scmp.ne.s32.totalorder %s192, %s206
      %p208 = scmp.eq.s32.totalorder %s25, 0
      %p209 = por %p207, %p208
      %s211 = sadd.s32 %s210, 1
      %p214 = scmp.eq.s32.totalorder %s19, 1
      %p215 = scmp.ne.s32.totalorder %s210, %s212
      %p216 = scmp.eq.s32.totalorder %s19, 0
      %p217 = por %p215, %p216
      %p218 = scmp.ne.s32.totalorder %s210, %s212
      %p219 = scmp.eq.s32.totalorder %s24, 1
      %p220 = por %p218, %p219
      %p221 = scmp.ne.s32.totalorder %s212, %s213
      %p222 = scmp.eq.s32.totalorder %s24, 0
      %p223 = por %p221, %p222
      %p224 = scmp.ne.s32.totalorder %s212, %s213
      %p225 = scmp.eq.s32.totalorder %s25, 1
      %p226 = por %p224, %p225
      %p228 = scmp.ne.s32.totalorder %s213, %s227
      %p229 = scmp.eq.s32.totalorder %s25, 0
      %p230 = por %p228, %p229
      %s232 = sadd.s32 %s231, 1
      %p235 = scmp.eq.s32.totalorder %s19, 1
      %p236 = scmp.ne.s32.totalorder %s231, %s233
      %p237 = scmp.eq.s32.totalorder %s19, 0
      %p238 = por %p236, %p237
      %p239 = scmp.ne.s32.totalorder %s231, %s233
      %p240 = scmp.eq.s32.totalorder %s24, 1
      %p241 = por %p239, %p240
      %p242 = scmp.ne.s32.totalorder %s233, %s234
      %p243 = scmp.eq.s32.totalorder %s24, 0
      %p244 = por %p242, %p243
      %p245 = scmp.ne.s32.totalorder %s233, %s234
      %p246 = scmp.eq.s32.totalorder %s25, 1
      %p247 = por %p245, %p246
      %p249 = scmp.ne.s32.totalorder %s234, %s248
      %p250 = scmp.eq.s32.totalorder %s25, 0
      %p251 = por %p249, %p250
      %s252 = ssub.s32 %s19, %s26
      %p253 = scmp.eq.s32.totalorder %s252, 0
      %s255 = sadd.s32 %s254, 1
      %s256 = scalar_select %p253, %s254, %s255
      %p259 = pneg %p253
      %p260 = scmp.eq.s32.totalorder %s19, 1
      %p261 = por %p259, %p260
      %p262 = scmp.ne.s32.totalorder %s254, %s257
      %p263 = scmp.eq.s32.totalorder %s19, 0
      %p264 = por %p262, %p263
      %p265 = scmp.ne.s32.totalorder %s254, %s257
      %p266 = scmp.eq.s32.totalorder %s24, 1
      %p267 = por %p265, %p266
      %p268 = scmp.ne.s32.totalorder %s257, %s258
      %p269 = scmp.eq.s32.totalorder %s24, 0
      %p270 = por %p268, %p269
      %p271 = scmp.ne.s32.totalorder %s257, %s258
      %p272 = scmp.eq.s32.totalorder %s25, 1
      %p273 = por %p271, %p272
      %p275 = scmp.ne.s32.totalorder %s258, %s274
      %p276 = scmp.eq.s32.totalorder %s25, 0
      %p277 = por %p275, %p276
      %p278 = scmp.le.s32.totalorder 1, %s19
      %p279 = scmp.lt.s32.totalorder %s19, 3
      %p280 = pnand %p278, %p279
      %p281 = pneg %p280
      // Predicated region
      $region9: #{tpu_custom_call.1} parent=5 // pred_check
        _
      $region10: #{tpu_custom_call.1} parent=5 // pred_check_branch
        %283 = sbr.rel (%p280) target = $region12
      $region11: #{tpu_custom_call.1} parent=5 // pred_region
        %s284 = ssub.s32 %s19, 1
        // Predicated region
        $region13: #{tpu_custom_call.1} parent=11 // pred_check
          %p285 = pneg %p118
        $region14: #{tpu_custom_call.1} parent=11 // pred_check_branch
          %287 = sbr.rel (%p285) target = $region16
        $region15: #{tpu_custom_call.1} parent=11 // pred_region
          _
        $region16: #{tpu_custom_call.1} parent=11 // pred_fallthru
          _
        // Predicated region
        $region17: #{tpu_custom_call.1} parent=11 // pred_check
          %p288 = pneg %p139
        $region18: #{tpu_custom_call.1} parent=11 // pred_check_branch
          %290 = sbr.rel (%p288) target = $region20
        $region19: #{tpu_custom_call.1} parent=11 // pred_region
          _
        $region20: #{tpu_custom_call.1} parent=11 // pred_fallthru
          _
        // Predicated region
        $region21: #{tpu_custom_call.1} parent=11 // pred_check
          %p291 = pneg %p160
        $region22: #{tpu_custom_call.1} parent=11 // pred_check_branch
          %293 = sbr.rel (%p291) target = $region24
        $region23: #{tpu_custom_call.1} parent=11 // pred_region
          _
        $region24: #{tpu_custom_call.1} parent=11 // pred_fallthru
          _
        // Predicated region
        $region25: #{tpu_custom_call.1} parent=11 // pred_check
          %p294 = pneg %p181
        $region26: #{tpu_custom_call.1} parent=11 // pred_check_branch
          %296 = sbr.rel (%p294) target = $region28
        $region27: #{tpu_custom_call.1} parent=11 // pred_region
          _
        $region28: #{tpu_custom_call.1} parent=11 // pred_fallthru
          _
        // Predicated region
        $region29: #{tpu_custom_call.1} parent=11 // pred_check
          %p297 = pneg %p202
        $region30: #{tpu_custom_call.1} parent=11 // pred_check_branch
          %299 = sbr.rel (%p297) target = $region32
        $region31: #{tpu_custom_call.1} parent=11 // pred_region
          _
        $region32: #{tpu_custom_call.1} parent=11 // pred_fallthru
          _
        // Predicated region
        $region33: #{tpu_custom_call.1} parent=11 // pred_check
          %p300 = pneg %p223
        $region34: #{tpu_custom_call.1} parent=11 // pred_check_branch
          %302 = sbr.rel (%p300) target = $region36
        $region35: #{tpu_custom_call.1} parent=11 // pred_region
          _
        $region36: #{tpu_custom_call.1} parent=11 // pred_fallthru
          _
        // Predicated region
        $region37: #{tpu_custom_call.1} parent=11 // pred_check
          %p303 = pneg %p244
        $region38: #{tpu_custom_call.1} parent=11 // pred_check_branch
          %305 = sbr.rel (%p303) target = $region40
        $region39: #{tpu_custom_call.1} parent=11 // pred_region
          _
        $region40: #{tpu_custom_call.1} parent=11 // pred_fallthru
          _
      $region12: #{tpu_custom_call.1} parent=5 // pred_fallthru
        _
      %p306 = scmp.lt.s32.totalorder %s19, 2
      // Predicated region
      $region41: #{tpu_custom_call.1} parent=5 // pred_check
        %p307 = pneg %p306
      $region42: #{tpu_custom_call.1} parent=5 // pred_check_branch
        %309 = sbr.rel (%p307) target = $region44
      $region43: #{tpu_custom_call.1} parent=5 // pred_region
        // Predicated region
        $region45: #{tpu_custom_call.1} parent=43 // pred_check
          %p310 = pneg %p39
        $region46: #{tpu_custom_call.1} parent=43 // pred_check_branch
          %312 = sbr.rel (%p310) target = $region48
        $region47: #{tpu_custom_call.1} parent=43 // pred_region
          %s313 = smul.u32 16, %s19
          %p314 = scmp.lt.s32.totalorder %s313, 31
          %s315 = scalar_select %p314, %s313, 31
          %s316 = smul.addr %s315, 4
          %s317 = scalar_lea.vmem %s0, %s316
          %s318 = smul.u32 16, %s19
        $region48: #{tpu_custom_call.1} parent=43 // pred_fallthru
          _
        // Predicated region
        $region49: #{tpu_custom_call.1} parent=43 // pred_check
          %p319 = pneg %p65
        $region50: #{tpu_custom_call.1} parent=43 // pred_check_branch
          %321 = sbr.rel (%p319) target = $region52
        $region51: #{tpu_custom_call.1} parent=43 // pred_region
          %s322 = smul.u32 16, %s19
          %p323 = scmp.lt.s32.totalorder %s322, 31
          %s324 = scalar_select %p323, %s322, 31
          %s325 = smul.addr %s324, 8
          %s326 = scalar_lea.vmem %s1, %s325
          %s327 = smul.u32 16, %s19
        $region52: #{tpu_custom_call.1} parent=43 // pred_fallthru
          _
        // Predicated region
        $region53: #{tpu_custom_call.1} parent=43 // pred_check
          %p328 = pneg %p91
        $region54: #{tpu_custom_call.1} parent=43 // pred_check_branch
          %330 = sbr.rel (%p328) target = $region56
        $region55: #{tpu_custom_call.1} parent=43 // pred_region
          %s331 = smul.u32 16, %s19
          %p332 = scmp.lt.s32.totalorder %s331, 31
          %s333 = scalar_select %p332, %s331, 31
          %s334 = smul.addr %s333, 8
          %s335 = scalar_lea.vmem %s2, %s334
          %s336 = smul.u32 16, %s19
        $region56: #{tpu_custom_call.1} parent=43 // pred_fallthru
          _
      $region44: #{tpu_custom_call.1} parent=5 // pred_fallthru
        _
      %p337 = scmp.le.s32.totalorder 1, %s19
      %p338 = scmp.lt.s32.totalorder %s19, 3
      %p339 = pnand %p337, %p338
      %p340 = pneg %p339
      // Predicated region
      $region57: #{tpu_custom_call.1} parent=5 // pred_check
        _
      $region58: #{tpu_custom_call.1} parent=5 // pred_check_branch
        %342 = sbr.rel (%p339) target = $region60
      $region59: #{tpu_custom_call.1} parent=5 // pred_region
        %s343 = ssub.s32 %s19, 1
        %s344 = smul.u32 16, %s24
        %p345 = scmp.lt.s32.totalorder %s344, 31
        %s346 = scalar_select %p345, %s344, 31
        %s347 = smul.addr %s346, 4
        %s348 = scalar_lea.vmem %s0, %s347
        %p349 = pneg %p45
        %p350 = pneg %p42
        %s351 = smul.u32 16, %s24
        %p352 = scmp.lt.s32.totalorder %s351, 31
        %s353 = scalar_select %p352, %s351, 31
        %s354 = smul.addr %s353, 8
        %s355 = scalar_lea.vmem %s1, %s354
        %p356 = pneg %p71
        %p357 = pneg %p68
        %s358 = smul.u32 16, %s24
        %p359 = scmp.lt.s32.totalorder %s358, 31
        %s360 = scalar_select %p359, %s358, 31
        %s361 = smul.addr %s360, 8
        %s362 = scalar_lea.vmem %s2, %s361
        %p363 = pneg %p97
        %p364 = pneg %p94
        %p365 = pneg %p118
        %p366 = pneg %p115
        %p367 = pneg %p139
        %p368 = pneg %p136
        %p369 = pneg %p160
        %p370 = pneg %p157
        %p371 = pneg %p181
        %p372 = pneg %p178
        %p373 = pneg %p202
        %p374 = pneg %p199
        %p375 = pneg %p223
        %p376 = pneg %p220
        %p377 = pneg %p244
        %p378 = pneg %p241
        %p379 = pneg %p270
        %p380 = pneg %p267
        %s381 = sand.u32 %s257, 1
        %s382 = scalar_lea.sflag [#allocation3], %s381
        %s383 = sand.u32 %s257, 1
        %s384 = smul.addr %s383, 128
        %s385 = scalar_lea.vmem [#allocation2], %s384
        %s386 = smul.u32 16, %s24
        %p387 = scmp.lt.s32.totalorder %s386, 31
        %s388 = scalar_select %p387, %s386, 31
        %s389 = smul.addr %s388, 4
        %s390 = scalar_lea.vmem %s0, %s389
        %s391 = smul.u32 16, %s24
        %s392 = smul.u32 16, %s24
        %p393 = scmp.lt.s32.totalorder %s392, 31
        %s394 = scalar_select %p393, %s392, 31
        %s395 = smul.addr %s394, 8
        %s396 = scalar_lea.vmem %s1, %s395
        %s397 = smul.u32 16, %s24
        %s398 = smul.u32 16, %s24
        %p399 = scmp.lt.s32.totalorder %s398, 31
        %s400 = scalar_select %p399, %s398, 31
        %s401 = smul.addr %s400, 8
        %s402 = scalar_lea.vmem %s2, %s401
        %s403 = smul.u32 16, %s24
        %s404 = smul.u32 16, %s24
        %v406 = vld [vmem:[%s390] sm:$0xf]
        %v407 = vld [vmem:[%s390 + $0x4] sm:$0xf]
        %v408 = vld [vmem:[%s390 + $0x8] sm:$0xf]
        %v409 = vld [vmem:[%s390 + $0xc] sm:$0xf]
        %v410 = vld [vmem:[%s390 + $0x10] sm:$0xf]
        %v411 = vld [vmem:[%s390 + $0x14] sm:$0xf]
        %v412 = vld [vmem:[%s390 + $0x18] sm:$0xf]
        %v413 = vld [vmem:[%s390 + $0x1c] sm:$0xf]
        %v414 = vld [vmem:[%s390 + $0x20] sm:$0xf]
        %v415 = vld [vmem:[%s390 + $0x24] sm:$0xf]
        %v416 = vld [vmem:[%s390 + $0x28] sm:$0xf]
        %v417 = vld [vmem:[%s390 + $0x2c] sm:$0xf]
        %v418 = vld [vmem:[%s390 + $0x30] sm:$0xf]
        %v419 = vld [vmem:[%s390 + $0x34] sm:$0xf]
        %v420 = vld [vmem:[%s390 + $0x38] sm:$0xf]
        %v421 = vld [vmem:[%s390 + $0x3c] sm:$0xf]
        %v422 = vld [vmem:[%s3] sm:$0xf]
        %v423 = vld [vmem:[%s3 + $0x4] sm:$0xf]
        %v424 = vld [vmem:[%s3 + $0x8] sm:$0xf]
        %v425 = vld [vmem:[%s3 + $0xc] sm:$0xf]
        %v426 = vld [vmem:[%s4] sm:$0x1]
        %v428 = vlaneseq
        %v429 = vshrl.u32 %v428, 7
        %v430 = vsub.s32 0, %v429
        %v431 = vrot.slane %v426, %v430
        %v449 = vunpack.c.l.b16 %v406
        %v450 = vunpack.c.l.b16 %v407
        %v451 = vunpack.c.l.b16 %v408
        %v452 = vunpack.c.l.b16 %v409
        %v453 = vunpack.c.l.b16 %v410
        %v454 = vunpack.c.l.b16 %v411
        %v455 = vunpack.c.l.b16 %v412
        %v456 = vunpack.c.l.b16 %v413
        %v457 = vunpack.c.l.b16 %v414
        %v458 = vunpack.c.l.b16 %v415
        %v459 = vunpack.c.l.b16 %v416
        %v460 = vunpack.c.l.b16 %v417
        %v461 = vunpack.c.l.b16 %v418
        %v462 = vunpack.c.l.b16 %v419
        %v463 = vunpack.c.l.b16 %v420
        %v464 = vunpack.c.l.b16 %v421
        %v465 = vpack.c.b16 %v450, %v449
        %v466 = vpack.c.b16 %v452, %v451
        %v467 = vpack.c.b16 %v454, %v453
        %v468 = vpack.c.b16 %v456, %v455
        %v469 = vpack.c.b16 %v458, %v457
        %v470 = vpack.c.b16 %v460, %v459
        %v471 = vpack.c.b16 %v462, %v461
        %v472 = vpack.c.b16 %v464, %v463
        %v477 = vunpack.c.l.b16 %v422
        %v478 = vunpack.c.l.b16 %v423
        %v479 = vunpack.c.l.b16 %v424
        %v480 = vunpack.c.l.b16 %v425
        %v481 = vpack.c.b16 %v478, %v477
        %v482 = vpack.c.b16 %v480, %v479
        %vm485 = vcmask 261120
        %v487 = vsel %vm485, %v465, 0
        %v490 = vsel %vm485, %v466, 0
        %v493 = vsel %vm485, %v467, 0
        %v496 = vsel %vm485, %v468, 0
        %v499 = vsel %vm485, %v469, 0
        %v502 = vsel %vm485, %v470, 0
        %v505 = vsel %vm485, %v471, 0
        %v508 = vsel %vm485, %v472, 0
        %510 = vmatprep.subr.bf16.mxu0 0
        %511 = vmatpush1.bf16.msra.mxu0 0
        %512 = vmatprep.subr.bf16.mxu0 0
        %513 = vmatpush1.bf16.msra.mxu0 0
        %514 = vmatprep.subr.bf16.mxu0 0
        %515 = vmatpush1.bf16.msra.mxu0 0
        %516 = vmatprep.subr.bf16.mxu0 0
        %517 = vmatpush1.bf16.msra.mxu0 0
        %518 = vmatprep.subr.bf16.mxu0 0
        %519 = vmatpush1.bf16.msra.mxu0 0
        %520 = vmatprep.subr.bf16.mxu0 0
        %521 = vmatpush1.bf16.msra.mxu0 0
        %522 = vmatprep.subr.bf16.mxu0 0
        %523 = vmatpush1.bf16.msra.mxu0 %v482
        %524 = vmatprep.subr.bf16.mxu0 0
        %525 = vmatpush1.bf16.msra.mxu0 %v481
        %526 = vmatprep.subr.bf16.mxu0 0
        %527 = vmatpush2.bf16.msra.mxu0 0
        %528 = vmatprep.subr.bf16.mxu0 0
        %529 = vmatpush2.bf16.msra.mxu0 0
        %530 = vmatprep.subr.bf16.mxu0 0
        %531 = vmatpush2.bf16.msra.mxu0 0
        %532 = vmatprep.subr.bf16.mxu0 0
        %533 = vmatpush2.bf16.msra.mxu0 0
        %534 = vmatprep.subr.bf16.mxu0 0
        %535 = vmatpush2.bf16.msra.mxu0 0
        %536 = vmatprep.subr.bf16.mxu0 0
        %537 = vmatpush2.bf16.msra.mxu0 0
        %538 = vmatprep.subr.bf16.mxu0 0
        %539 = vmatpush2.bf16.msra.mxu0 0
        %540 = vmatprep.subr.bf16.mxu0 0
        %541 = vmatpush2.bf16.msra.mxu0 0
        %542 = vmatprep.mubr.bf16.mxu0 0
        %543 = vmatmul.mubr.bf16.gmra.mxu0 %v487
        %v544 = vpop.f32.mrf.mxu0
        %v545 = vadd.f32 %v431, %v544
        %v546 = vpop.f32.mrf.mxu0
        %v547 = vpop.f32.mrf.mxu0
        %v548 = vadd.f32 %v431, %v547
        %v549 = vpop.f32.mrf.mxu0
        %550 = vmatprep.mubr.bf16.mxu0 0
        %551 = vmatmul.mubr.bf16.gmra.mxu0 %v490
        %v552 = vpop.f32.mrf.mxu0
        %v553 = vadd.f32 %v431, %v552
        %v554 = vpop.f32.mrf.mxu0
        %v555 = vpop.f32.mrf.mxu0
        %v556 = vadd.f32 %v431, %v555
        %v557 = vpop.f32.mrf.mxu0
        %558 = vmatprep.mubr.bf16.mxu0 0
        %559 = vmatmul.mubr.bf16.gmra.mxu0 %v493
        %v560 = vpop.f32.mrf.mxu0
        %v561 = vadd.f32 %v431, %v560
        %v562 = vpop.f32.mrf.mxu0
        %v563 = vpop.f32.mrf.mxu0
        %v564 = vadd.f32 %v431, %v563
        %v565 = vpop.f32.mrf.mxu0
        %566 = vmatprep.mubr.bf16.mxu0 0
        %567 = vmatmul.mubr.bf16.gmra.mxu0 %v496
        %v568 = vpop.f32.mrf.mxu0
        %v569 = vadd.f32 %v431, %v568
        %v570 = vpop.f32.mrf.mxu0
        %v571 = vpop.f32.mrf.mxu0
        %v572 = vadd.f32 %v431, %v571
        %v573 = vpop.f32.mrf.mxu0
        %574 = vmatprep.mubr.bf16.mxu0 0
        %575 = vmatmul.mubr.bf16.gmra.mxu0 %v499
        %v576 = vpop.f32.mrf.mxu0
        %v577 = vadd.f32 %v431, %v576
        %v578 = vpop.f32.mrf.mxu0
        %v579 = vpop.f32.mrf.mxu0
        %v580 = vadd.f32 %v431, %v579
        %v581 = vpop.f32.mrf.mxu0
        %582 = vmatprep.mubr.bf16.mxu0 0
        %583 = vmatmul.mubr.bf16.gmra.mxu0 %v502
        %v584 = vpop.f32.mrf.mxu0
        %v585 = vadd.f32 %v431, %v584
        %v586 = vpop.f32.mrf.mxu0
        %v587 = vpop.f32.mrf.mxu0
        %v588 = vadd.f32 %v431, %v587
        %v589 = vpop.f32.mrf.mxu0
        %590 = vmatprep.mubr.bf16.mxu0 0
        %591 = vmatmul.mubr.bf16.gmra.mxu0 %v505
        %v592 = vpop.f32.mrf.mxu0
        %v593 = vadd.f32 %v431, %v592
        %v594 = vpop.f32.mrf.mxu0
        %v595 = vpop.f32.mrf.mxu0
        %v596 = vadd.f32 %v431, %v595
        %v597 = vpop.f32.mrf.mxu0
        %598 = vmatprep.mubr.bf16.mxu0 0
        %599 = vmatmul.mubr.bf16.gmra.mxu0 %v508
        %v600 = vpop.f32.mrf.mxu0
        %v601 = vadd.f32 %v431, %v600
        %v602 = vpop.f32.mrf.mxu0
        %v603 = vpop.f32.mrf.mxu0
        %v604 = vadd.f32 %v431, %v603
        %v605 = vpop.f32.mrf.mxu0
        %606 = vdwg.mxu0
        %v607 = vmax.f32 %v545, 0.0
        %v608 = vmax.f32 %v548, 0.0
        %v609 = vmax.f32 %v553, 0.0
        %v610 = vmax.f32 %v556, 0.0
        %v611 = vmax.f32 %v561, 0.0
        %v612 = vmax.f32 %v564, 0.0
        %v613 = vmax.f32 %v569, 0.0
        %v614 = vmax.f32 %v572, 0.0
        %v615 = vmax.f32 %v577, 0.0
        %v616 = vmax.f32 %v580, 0.0
        %v617 = vmax.f32 %v585, 0.0
        %v618 = vmax.f32 %v588, 0.0
        %v619 = vmax.f32 %v593, 0.0
        %v620 = vmax.f32 %v596, 0.0
        %v621 = vmax.f32 %v601, 0.0
        %v622 = vmax.f32 %v604, 0.0
        %v623 = vpack.c.bf16 %v608, %v607
        %v624 = vpack.c.bf16 %v610, %v609
        %v625 = vpack.c.bf16 %v612, %v611
        %v626 = vpack.c.bf16 %v614, %v613
        %v627 = vpack.c.bf16 %v616, %v615
        %v628 = vpack.c.bf16 %v618, %v617
        %v629 = vpack.c.bf16 %v620, %v619
        %v630 = vpack.c.bf16 %v622, %v621
        %v631 = vld [vmem:[%s5] sm:$0xf]
        %v632 = vld [vmem:[%s5 + $0x4] sm:$0xf]
        %v633 = vld [vmem:[%s5 + $0x8] sm:$0xf]
        %v634 = vld [vmem:[%s5 + $0xc] sm:$0xf]
        %v635 = vld [vmem:[%s5 + $0x10] sm:$0xf]
        %v636 = vld [vmem:[%s5 + $0x14] sm:$0xf]
        %v637 = vld [vmem:[%s5 + $0x18] sm:$0xf]
        %v638 = vld [vmem:[%s5 + $0x1c] sm:$0xf]
        %v639 = vld [vmem:[%s396] sm:$0xff]
        %v640 = vld [vmem:[%s396 + $0x8] sm:$0xff]
        %v641 = vld [vmem:[%s396 + $0x10] sm:$0xff]
        %v642 = vld [vmem:[%s396 + $0x18] sm:$0xff]
        %v643 = vld [vmem:[%s396 + $0x20] sm:$0xff]
        %v644 = vld [vmem:[%s396 + $0x28] sm:$0xff]
        %v645 = vld [vmem:[%s396 + $0x30] sm:$0xff]
        %v646 = vld [vmem:[%s396 + $0x38] sm:$0xff]
        %v647 = vld [vmem:[%s396 + $0x40] sm:$0xff]
        %v648 = vld [vmem:[%s396 + $0x48] sm:$0xff]
        %v649 = vld [vmem:[%s396 + $0x50] sm:$0xff]
        %v650 = vld [vmem:[%s396 + $0x58] sm:$0xff]
        %v651 = vld [vmem:[%s396 + $0x60] sm:$0xff]
        %v652 = vld [vmem:[%s396 + $0x68] sm:$0xff]
        %v653 = vld [vmem:[%s396 + $0x70] sm:$0xff]
        %v654 = vld [vmem:[%s396 + $0x78] sm:$0xff]
        %v655 = vpack.c.bf16 %v640, %v639
        %v656 = vpack.c.bf16 %v642, %v641
        %v657 = vpack.c.bf16 %v644, %v643
        %v658 = vpack.c.bf16 %v646, %v645
        %v659 = vpack.c.bf16 %v648, %v647
        %v660 = vpack.c.bf16 %v650, %v649
        %v661 = vpack.c.bf16 %v652, %v651
        %v662 = vpack.c.bf16 %v654, %v653
        %v663 = vld [vmem:[%s6] sm:$0xf]
        %v664 = vld [vmem:[%s6 + $0x4] sm:$0xf]
        %v665 = vld [vmem:[%s6 + $0x8] sm:$0xf]
        %v666 = vld [vmem:[%s6 + $0xc] sm:$0xf]
        %v671 = vunpack.c.l.b16 %v663
        %v672 = vunpack.c.l.b16 %v664
        %v673 = vunpack.c.l.b16 %v665
        %v674 = vunpack.c.l.b16 %v666
        %v675 = vpack.c.b16 %v672, %v671
        %v676 = vpack.c.b16 %v674, %v673
        %v680 = vsel %vm485, %v655, 0
        %v683 = vsel %vm485, %v656, 0
        %v686 = vsel %vm485, %v657, 0
        %v689 = vsel %vm485, %v658, 0
        %v692 = vsel %vm485, %v659, 0
        %v695 = vsel %vm485, %v660, 0
        %v698 = vsel %vm485, %v661, 0
        %v701 = vsel %vm485, %v662, 0
        %703 = vmatprep.subr.bf16.mxu0 0
        %704 = vmatpush1.bf16.msra.mxu0 0
        %705 = vmatprep.subr.bf16.mxu0 0
        %706 = vmatpush1.bf16.msra.mxu0 0
        %707 = vmatprep.subr.bf16.mxu0 0
        %708 = vmatpush1.bf16.msra.mxu0 0
        %709 = vmatprep.subr.bf16.mxu0 0
        %710 = vmatpush1.bf16.msra.mxu0 0
        %711 = vmatprep.subr.bf16.mxu0 0
        %712 = vmatpush1.bf16.msra.mxu0 0
        %713 = vmatprep.subr.bf16.mxu0 0
        %714 = vmatpush1.bf16.msra.mxu0 0
        %715 = vmatprep.subr.bf16.mxu0 0
        %716 = vmatpush1.bf16.msra.mxu0 %v676
        %717 = vmatprep.subr.bf16.mxu0 0
        %718 = vmatpush1.bf16.msra.mxu0 %v675
        %719 = vmatprep.subr.bf16.mxu0 0
        %720 = vmatpush2.bf16.msra.mxu0 0
        %721 = vmatprep.subr.bf16.mxu0 0
        %722 = vmatpush2.bf16.msra.mxu0 0
        %723 = vmatprep.subr.bf16.mxu0 0
        %724 = vmatpush2.bf16.msra.mxu0 0
        %725 = vmatprep.subr.bf16.mxu0 0
        %726 = vmatpush2.bf16.msra.mxu0 0
        %727 = vmatprep.subr.bf16.mxu0 0
        %728 = vmatpush2.bf16.msra.mxu0 0
        %729 = vmatprep.subr.bf16.mxu0 0
        %730 = vmatpush2.bf16.msra.mxu0 0
        %731 = vmatprep.subr.bf16.mxu0 0
        %732 = vmatpush2.bf16.msra.mxu0 0
        %733 = vmatprep.subr.bf16.mxu0 0
        %734 = vmatpush2.bf16.msra.mxu0 0
        %735 = vmatprep.mubr.bf16.mxu0 0
        %736 = vmatmul.mubr.bf16.gmra.mxu0 %v680
        %v737 = vpop.f32.mrf.mxu0
        %v738 = vadd.f32 0.0, %v737
        %v739 = vpop.f32.mrf.mxu0
        %v740 = vpop.f32.mrf.mxu0
        %v741 = vadd.f32 0.0, %v740
        %v742 = vpop.f32.mrf.mxu0
        %743 = vmatprep.mubr.bf16.mxu0 0
        %744 = vmatmul.mubr.bf16.gmra.mxu0 %v683
        %v745 = vpop.f32.mrf.mxu0
        %v746 = vadd.f32 0.0, %v745
        %v747 = vpop.f32.mrf.mxu0
        %v748 = vpop.f32.mrf.mxu0
        %v749 = vadd.f32 0.0, %v748
        %v750 = vpop.f32.mrf.mxu0
        %751 = vmatprep.mubr.bf16.mxu0 0
        %752 = vmatmul.mubr.bf16.gmra.mxu0 %v686
        %v753 = vpop.f32.mrf.mxu0
        %v754 = vadd.f32 0.0, %v753
        %v755 = vpop.f32.mrf.mxu0
        %v756 = vpop.f32.mrf.mxu0
        %v757 = vadd.f32 0.0, %v756
        %v758 = vpop.f32.mrf.mxu0
        %759 = vmatprep.mubr.bf16.mxu0 0
        %760 = vmatmul.mubr.bf16.gmra.mxu0 %v689
        %v761 = vpop.f32.mrf.mxu0
        %v762 = vadd.f32 0.0, %v761
        %v763 = vpop.f32.mrf.mxu0
        %v764 = vpop.f32.mrf.mxu0
        %v765 = vadd.f32 0.0, %v764
        %v766 = vpop.f32.mrf.mxu0
        %767 = vmatprep.mubr.bf16.mxu0 0
        %768 = vmatmul.mubr.bf16.gmra.mxu0 %v692
        %v769 = vpop.f32.mrf.mxu0
        %v770 = vadd.f32 0.0, %v769
        %v771 = vpop.f32.mrf.mxu0
        %v772 = vpop.f32.mrf.mxu0
        %v773 = vadd.f32 0.0, %v772
        %v774 = vpop.f32.mrf.mxu0
        %775 = vmatprep.mubr.bf16.mxu0 0
        %776 = vmatmul.mubr.bf16.gmra.mxu0 %v695
        %v777 = vpop.f32.mrf.mxu0
        %v778 = vadd.f32 0.0, %v777
        %v779 = vpop.f32.mrf.mxu0
        %v780 = vpop.f32.mrf.mxu0
        %v781 = vadd.f32 0.0, %v780
        %v782 = vpop.f32.mrf.mxu0
        %783 = vmatprep.mubr.bf16.mxu0 0
        %784 = vmatmul.mubr.bf16.gmra.mxu0 %v698
        %v785 = vpop.f32.mrf.mxu0
        %v786 = vadd.f32 0.0, %v785
        %v787 = vpop.f32.mrf.mxu0
        %v788 = vpop.f32.mrf.mxu0
        %v789 = vadd.f32 0.0, %v788
        %v790 = vpop.f32.mrf.mxu0
        %791 = vmatprep.mubr.bf16.mxu0 0
        %792 = vmatmul.mubr.bf16.gmra.mxu0 %v701
        %v793 = vpop.f32.mrf.mxu0
        %v794 = vadd.f32 0.0, %v793
        %v795 = vpop.f32.mrf.mxu0
        %v796 = vpop.f32.mrf.mxu0
        %v797 = vadd.f32 0.0, %v796
        %v798 = vpop.f32.mrf.mxu0
        %799 = vdwg.mxu0
        %v808 = vunpack.c.l.b16 %v631
        %v809 = vunpack.c.l.b16 %v632
        %v810 = vunpack.c.l.b16 %v633
        %v811 = vunpack.c.l.b16 %v634
        %v812 = vunpack.c.l.b16 %v635
        %v813 = vunpack.c.l.b16 %v636
        %v814 = vunpack.c.l.b16 %v637
        %v815 = vunpack.c.l.b16 %v638
        %v816 = vpack.c.b16 %v809, %v808
        %v817 = vpack.c.b16 %v811, %v810
        %v818 = vpack.c.b16 %v813, %v812
        %v819 = vpack.c.b16 %v815, %v814
        %vm824 = vcmask 523264
        %v826 = vsel %vm824, %v623, 0
        %v829 = vsel %vm824, %v624, 0
        %v832 = vsel %vm824, %v625, 0
        %v835 = vsel %vm824, %v626, 0
        %v838 = vsel %vm824, %v627, 0
        %v841 = vsel %vm824, %v628, 0
        %v844 = vsel %vm824, %v629, 0
        %v847 = vsel %vm824, %v630, 0
        %849 = vmatprep.subr.bf16.mxu0 0
        %850 = vmatpush1.bf16.msra.mxu0 0
        %851 = vmatprep.subr.bf16.mxu0 0
        %852 = vmatpush1.bf16.msra.mxu0 0
        %853 = vmatprep.subr.bf16.mxu0 0
        %854 = vmatpush1.bf16.msra.mxu0 0
        %855 = vmatprep.subr.bf16.mxu0 0
        %856 = vmatpush1.bf16.msra.mxu0 0
        %857 = vmatprep.subr.bf16.mxu0 0
        %858 = vmatpush1.bf16.msra.mxu0 %v819
        %859 = vmatprep.subr.bf16.mxu0 0
        %860 = vmatpush1.bf16.msra.mxu0 %v818
        %861 = vmatprep.subr.bf16.mxu0 0
        %862 = vmatpush1.bf16.msra.mxu0 %v817
        %863 = vmatprep.subr.bf16.mxu0 0
        %864 = vmatpush1.bf16.msra.mxu0 %v816
        %865 = vmatprep.subr.bf16.mxu0 0
        %866 = vmatpush2.bf16.msra.mxu0 0
        %867 = vmatprep.subr.bf16.mxu0 0
        %868 = vmatpush2.bf16.msra.mxu0 0
        %869 = vmatprep.subr.bf16.mxu0 0
        %870 = vmatpush2.bf16.msra.mxu0 0
        %871 = vmatprep.subr.bf16.mxu0 0
        %872 = vmatpush2.bf16.msra.mxu0 0
        %873 = vmatprep.subr.bf16.mxu0 0
        %874 = vmatpush2.bf16.msra.mxu0 0
        %875 = vmatprep.subr.bf16.mxu0 0
        %876 = vmatpush2.bf16.msra.mxu0 0
        %877 = vmatprep.subr.bf16.mxu0 0
        %878 = vmatpush2.bf16.msra.mxu0 0
        %879 = vmatprep.subr.bf16.mxu0 0
        %880 = vmatpush2.bf16.msra.mxu0 0
        %881 = vmatprep.mubr.bf16.mxu0 0
        %882 = vmatmul.mubr.bf16.gmra.mxu0 %v826
        %v883 = vpop.f32.mrf.mxu0
        %v884 = vadd.f32 %v738, %v883
        %v885 = vpop.f32.mrf.mxu0
        %v886 = vpop.f32.mrf.mxu0
        %v887 = vadd.f32 %v741, %v886
        %v888 = vpop.f32.mrf.mxu0
        %889 = vmatprep.mubr.bf16.mxu0 0
        %890 = vmatmul.mubr.bf16.gmra.mxu0 %v829
        %v891 = vpop.f32.mrf.mxu0
        %v892 = vadd.f32 %v746, %v891
        %v893 = vpop.f32.mrf.mxu0
        %v894 = vpop.f32.mrf.mxu0
        %v895 = vadd.f32 %v749, %v894
        %v896 = vpop.f32.mrf.mxu0
        %897 = vmatprep.mubr.bf16.mxu0 0
        %898 = vmatmul.mubr.bf16.gmra.mxu0 %v832
        %v899 = vpop.f32.mrf.mxu0
        %v900 = vadd.f32 %v754, %v899
        %v901 = vpop.f32.mrf.mxu0
        %v902 = vpop.f32.mrf.mxu0
        %v903 = vadd.f32 %v757, %v902
        %v904 = vpop.f32.mrf.mxu0
        %905 = vmatprep.mubr.bf16.mxu0 0
        %906 = vmatmul.mubr.bf16.gmra.mxu0 %v835
        %v907 = vpop.f32.mrf.mxu0
        %v908 = vadd.f32 %v762, %v907
        %v909 = vpop.f32.mrf.mxu0
        %v910 = vpop.f32.mrf.mxu0
        %v911 = vadd.f32 %v765, %v910
        %v912 = vpop.f32.mrf.mxu0
        %913 = vmatprep.mubr.bf16.mxu0 0
        %914 = vmatmul.mubr.bf16.gmra.mxu0 %v838
        %v915 = vpop.f32.mrf.mxu0
        %v916 = vadd.f32 %v770, %v915
        %v917 = vpop.f32.mrf.mxu0
        %v918 = vpop.f32.mrf.mxu0
        %v919 = vadd.f32 %v773, %v918
        %v920 = vpop.f32.mrf.mxu0
        %921 = vmatprep.mubr.bf16.mxu0 0
        %922 = vmatmul.mubr.bf16.gmra.mxu0 %v841
        %v923 = vpop.f32.mrf.mxu0
        %v924 = vadd.f32 %v778, %v923
        %v925 = vpop.f32.mrf.mxu0
        %v926 = vpop.f32.mrf.mxu0
        %v927 = vadd.f32 %v781, %v926
        %v928 = vpop.f32.mrf.mxu0
        %929 = vmatprep.mubr.bf16.mxu0 0
        %930 = vmatmul.mubr.bf16.gmra.mxu0 %v844
        %v931 = vpop.f32.mrf.mxu0
        %v932 = vadd.f32 %v786, %v931
        %v933 = vpop.f32.mrf.mxu0
        %v934 = vpop.f32.mrf.mxu0
        %v935 = vadd.f32 %v789, %v934
        %v936 = vpop.f32.mrf.mxu0
        %937 = vmatprep.mubr.bf16.mxu0 0
        %938 = vmatmul.mubr.bf16.gmra.mxu0 %v847
        %v939 = vpop.f32.mrf.mxu0
        %v940 = vadd.f32 %v794, %v939
        %v941 = vpop.f32.mrf.mxu0
        %v942 = vpop.f32.mrf.mxu0
        %v943 = vadd.f32 %v797, %v942
        %v944 = vpop.f32.mrf.mxu0
        %945 = vdwg.mxu0
        %v946 = vld [vmem:[%s7] sm:$0x1]
        %v948 = vlaneseq
        %v949 = vshrl.u32 %v948, 7
        %v950 = vsub.s32 0, %v949
        %v951 = vrot.slane %v946, %v950
        %v953 = vadd.f32 %v884, %v951
        %v954 = vadd.f32 %v887, %v951
        %v955 = vadd.f32 %v892, %v951
        %v956 = vadd.f32 %v895, %v951
        %v957 = vadd.f32 %v900, %v951
        %v958 = vadd.f32 %v903, %v951
        %v959 = vadd.f32 %v908, %v951
        %v960 = vadd.f32 %v911, %v951
        %v961 = vadd.f32 %v916, %v951
        %v962 = vadd.f32 %v919, %v951
        %v963 = vadd.f32 %v924, %v951
        %v964 = vadd.f32 %v927, %v951
        %v965 = vadd.f32 %v932, %v951
        %v966 = vadd.f32 %v935, %v951
        %v967 = vadd.f32 %v940, %v951
        %v968 = vadd.f32 %v943, %v951
        %v969 = vxor.u32 %v953, 2147483648
        %v970 = vxor.u32 %v954, 2147483648
        %v971 = vxor.u32 %v955, 2147483648
        %v972 = vxor.u32 %v956, 2147483648
        %v973 = vxor.u32 %v957, 2147483648
        %v974 = vxor.u32 %v958, 2147483648
        %v975 = vxor.u32 %v959, 2147483648
        %v976 = vxor.u32 %v960, 2147483648
        %v977 = vxor.u32 %v961, 2147483648
        %v978 = vxor.u32 %v962, 2147483648
        %v979 = vxor.u32 %v963, 2147483648
        %v980 = vxor.u32 %v964, 2147483648
        %v981 = vxor.u32 %v965, 2147483648
        %v982 = vxor.u32 %v966, 2147483648
        %v983 = vxor.u32 %v967, 2147483648
        %v984 = vxor.u32 %v968, 2147483648
        %v985 = vmul.f32 %v969, 1.442695
        %v986 = vpow.pop %v985
        %v987 = vmul.f32 %v970, 1.442695
        %v988 = vpow.pop %v987
        %v989 = vmul.f32 %v971, 1.442695
        %v990 = vpow.pop %v989
        %v991 = vmul.f32 %v972, 1.442695
        %v992 = vpow.pop %v991
        %v993 = vmul.f32 %v973, 1.442695
        %v994 = vpow.pop %v993
        %v995 = vmul.f32 %v974, 1.442695
        %v996 = vpow.pop %v995
        %v997 = vmul.f32 %v975, 1.442695
        %v998 = vpow.pop %v997
        %v999 = vmul.f32 %v976, 1.442695
        %v1000 = vpow.pop %v999
        %v1001 = vmul.f32 %v977, 1.442695
        %v1002 = vpow.pop %v1001
        %v1003 = vmul.f32 %v978, 1.442695
        %v1004 = vpow.pop %v1003
        %v1005 = vmul.f32 %v979, 1.442695
        %v1006 = vpow.pop %v1005
        %v1007 = vmul.f32 %v980, 1.442695
        %v1008 = vpow.pop %v1007
        %v1009 = vmul.f32 %v981, 1.442695
        %v1010 = vpow.pop %v1009
        %v1011 = vmul.f32 %v982, 1.442695
        %v1012 = vpow.pop %v1011
        %v1013 = vmul.f32 %v983, 1.442695
        %v1014 = vpow.pop %v1013
        %v1015 = vmul.f32 %v984, 1.442695
        %v1016 = vpow.pop %v1015
        %v1017 = vadd.f32 %v986, 1.0
        %v1018 = vadd.f32 %v988, 1.0
        %v1019 = vadd.f32 %v990, 1.0
        %v1020 = vadd.f32 %v992, 1.0
        %v1021 = vadd.f32 %v994, 1.0
        %v1022 = vadd.f32 %v996, 1.0
        %v1023 = vadd.f32 %v998, 1.0
        %v1024 = vadd.f32 %v1000, 1.0
        %v1025 = vadd.f32 %v1002, 1.0
        %v1026 = vadd.f32 %v1004, 1.0
        %v1027 = vadd.f32 %v1006, 1.0
        %v1028 = vadd.f32 %v1008, 1.0
        %v1029 = vadd.f32 %v1010, 1.0
        %v1030 = vadd.f32 %v1012, 1.0
        %v1031 = vadd.f32 %v1014, 1.0
        %v1032 = vadd.f32 %v1016, 1.0
        %v1033 = vrcp.pop %v1017
        %v1034 = vmul.f32 1.0, %v1033
        %v1035 = vrcp.pop %v1018
        %v1036 = vmul.f32 1.0, %v1035
        %v1037 = vrcp.pop %v1019
        %v1038 = vmul.f32 1.0, %v1037
        %v1039 = vrcp.pop %v1020
        %v1040 = vmul.f32 1.0, %v1039
        %v1041 = vrcp.pop %v1021
        %v1042 = vmul.f32 1.0, %v1041
        %v1043 = vrcp.pop %v1022
        %v1044 = vmul.f32 1.0, %v1043
        %v1045 = vrcp.pop %v1023
        %v1046 = vmul.f32 1.0, %v1045
        %v1047 = vrcp.pop %v1024
        %v1048 = vmul.f32 1.0, %v1047
        %v1049 = vrcp.pop %v1025
        %v1050 = vmul.f32 1.0, %v1049
        %v1051 = vrcp.pop %v1026
        %v1052 = vmul.f32 1.0, %v1051
        %v1053 = vrcp.pop %v1027
        %v1054 = vmul.f32 1.0, %v1053
        %v1055 = vrcp.pop %v1028
        %v1056 = vmul.f32 1.0, %v1055
        %v1057 = vrcp.pop %v1029
        %v1058 = vmul.f32 1.0, %v1057
        %v1059 = vrcp.pop %v1030
        %v1060 = vmul.f32 1.0, %v1059
        %v1061 = vrcp.pop %v1031
        %v1062 = vmul.f32 1.0, %v1061
        %v1063 = vrcp.pop %v1032
        %v1064 = vmul.f32 1.0, %v1063
        %v1065 = vtanh.pop %v953
        %v1066 = vtanh.pop %v954
        %v1067 = vtanh.pop %v955
        %v1068 = vtanh.pop %v956
        %v1069 = vtanh.pop %v957
        %v1070 = vtanh.pop %v958
        %v1071 = vtanh.pop %v959
        %v1072 = vtanh.pop %v960
        %v1073 = vtanh.pop %v961
        %v1074 = vtanh.pop %v962
        %v1075 = vtanh.pop %v963
        %v1076 = vtanh.pop %v964
        %v1077 = vtanh.pop %v965
        %v1078 = vtanh.pop %v966
        %v1079 = vtanh.pop %v967
        %v1080 = vtanh.pop %v968
        %v1081 = vld [vmem:[%s402] sm:$0xff]
        %v1082 = vld [vmem:[%s402 + $0x8] sm:$0xff]
        %v1083 = vld [vmem:[%s402 + $0x10] sm:$0xff]
        %v1084 = vld [vmem:[%s402 + $0x18] sm:$0xff]
        %v1085 = vld [vmem:[%s402 + $0x20] sm:$0xff]
        %v1086 = vld [vmem:[%s402 + $0x28] sm:$0xff]
        %v1087 = vld [vmem:[%s402 + $0x30] sm:$0xff]
        %v1088 = vld [vmem:[%s402 + $0x38] sm:$0xff]
        %v1089 = vld [vmem:[%s402 + $0x40] sm:$0xff]
        %v1090 = vld [vmem:[%s402 + $0x48] sm:$0xff]
        %v1091 = vld [vmem:[%s402 + $0x50] sm:$0xff]
        %v1092 = vld [vmem:[%s402 + $0x58] sm:$0xff]
        %v1093 = vld [vmem:[%s402 + $0x60] sm:$0xff]
        %v1094 = vld [vmem:[%s402 + $0x68] sm:$0xff]
        %v1095 = vld [vmem:[%s402 + $0x70] sm:$0xff]
        %v1096 = vld [vmem:[%s402 + $0x78] sm:$0xff]
        %1113 = vrot.lane.b32.xlu0 %v1081, 32
        %v1114 = vpop.permute.xlu0 %1113
        %1115 = vrot.lane.b32.xlu0 %v1082, 32
        %v1116 = vpop.permute.xlu0 %1115
        %1117 = vrot.lane.b32.xlu0 %v1083, 32
        %v1118 = vpop.permute.xlu0 %1117
        %1119 = vrot.lane.b32.xlu0 %v1084, 32
        %v1120 = vpop.permute.xlu0 %1119
        %1121 = vrot.lane.b32.xlu0 %v1085, 32
        %v1122 = vpop.permute.xlu0 %1121
        %1123 = vrot.lane.b32.xlu0 %v1086, 32
        %v1124 = vpop.permute.xlu0 %1123
        %1125 = vrot.lane.b32.xlu0 %v1087, 32
        %v1126 = vpop.permute.xlu0 %1125
        %1127 = vrot.lane.b32.xlu0 %v1088, 32
        %v1128 = vpop.permute.xlu0 %1127
        %1129 = vrot.lane.b32.xlu0 %v1089, 32
        %v1130 = vpop.permute.xlu0 %1129
        %1131 = vrot.lane.b32.xlu0 %v1090, 32
        %v1132 = vpop.permute.xlu0 %1131
        %1133 = vrot.lane.b32.xlu0 %v1091, 32
        %v1134 = vpop.permute.xlu0 %1133
        %1135 = vrot.lane.b32.xlu0 %v1092, 32
        %v1136 = vpop.permute.xlu0 %1135
        %1137 = vrot.lane.b32.xlu0 %v1093, 32
        %v1138 = vpop.permute.xlu0 %1137
        %1139 = vrot.lane.b32.xlu0 %v1094, 32
        %v1140 = vpop.permute.xlu0 %1139
        %1141 = vrot.lane.b32.xlu0 %v1095, 32
        %v1142 = vpop.permute.xlu0 %1141
        %1143 = vrot.lane.b32.xlu0 %v1096, 32
        %v1144 = vpop.permute.xlu0 %1143
        %v1161 = vmul.f32 %v1034, %v1114
        %v1162 = vmul.f32 %v1036, %v1116
        %v1163 = vmul.f32 %v1038, %v1118
        %v1164 = vmul.f32 %v1040, %v1120
        %v1165 = vmul.f32 %v1042, %v1122
        %v1166 = vmul.f32 %v1044, %v1124
        %v1167 = vmul.f32 %v1046, %v1126
        %v1168 = vmul.f32 %v1048, %v1128
        %v1169 = vmul.f32 %v1050, %v1130
        %v1170 = vmul.f32 %v1052, %v1132
        %v1171 = vmul.f32 %v1054, %v1134
        %v1172 = vmul.f32 %v1056, %v1136
        %v1173 = vmul.f32 %v1058, %v1138
        %v1174 = vmul.f32 %v1060, %v1140
        %v1175 = vmul.f32 %v1062, %v1142
        %v1176 = vmul.f32 %v1064, %v1144
        %1193 = vrot.lane.b32.xlu0 %v1065, 64
        %v1194 = vpop.permute.xlu0 %1193
        %1195 = vrot.lane.b32.xlu0 %v1066, 64
        %v1196 = vpop.permute.xlu0 %1195
        %1197 = vrot.lane.b32.xlu0 %v1067, 64
        %v1198 = vpop.permute.xlu0 %1197
        %1199 = vrot.lane.b32.xlu0 %v1068, 64
        %v1200 = vpop.permute.xlu0 %1199
        %1201 = vrot.lane.b32.xlu0 %v1069, 64
        %v1202 = vpop.permute.xlu0 %1201
        %1203 = vrot.lane.b32.xlu0 %v1070, 64
        %v1204 = vpop.permute.xlu0 %1203
        %1205 = vrot.lane.b32.xlu0 %v1071, 64
        %v1206 = vpop.permute.xlu0 %1205
        %1207 = vrot.lane.b32.xlu0 %v1072, 64
        %v1208 = vpop.permute.xlu0 %1207
        %1209 = vrot.lane.b32.xlu0 %v1073, 64
        %v1210 = vpop.permute.xlu0 %1209
        %1211 = vrot.lane.b32.xlu0 %v1074, 64
        %v1212 = vpop.permute.xlu0 %1211
        %1213 = vrot.lane.b32.xlu0 %v1075, 64
        %v1214 = vpop.permute.xlu0 %1213
        %1215 = vrot.lane.b32.xlu0 %v1076, 64
        %v1216 = vpop.permute.xlu0 %1215
        %1217 = vrot.lane.b32.xlu0 %v1077, 64
        %v1218 = vpop.permute.xlu0 %1217
        %1219 = vrot.lane.b32.xlu0 %v1078, 64
        %v1220 = vpop.permute.xlu0 %1219
        %1221 = vrot.lane.b32.xlu0 %v1079, 64
        %v1222 = vpop.permute.xlu0 %1221
        %1223 = vrot.lane.b32.xlu0 %v1080, 64
        %v1224 = vpop.permute.xlu0 %1223
        %v1241 = vmul.f32 %v1034, %v1194
        %v1242 = vmul.f32 %v1036, %v1196
        %v1243 = vmul.f32 %v1038, %v1198
        %v1244 = vmul.f32 %v1040, %v1200
        %v1245 = vmul.f32 %v1042, %v1202
        %v1246 = vmul.f32 %v1044, %v1204
        %v1247 = vmul.f32 %v1046, %v1206
        %v1248 = vmul.f32 %v1048, %v1208
        %v1249 = vmul.f32 %v1050, %v1210
        %v1250 = vmul.f32 %v1052, %v1212
        %v1251 = vmul.f32 %v1054, %v1214
        %v1252 = vmul.f32 %v1056, %v1216
        %v1253 = vmul.f32 %v1058, %v1218
        %v1254 = vmul.f32 %v1060, %v1220
        %v1255 = vmul.f32 %v1062, %v1222
        %v1256 = vmul.f32 %v1064, %v1224
        %1273 = vrot.lane.b32.xlu0 %v1241, 32
        %v1274 = vpop.permute.xlu0 %1273
        %1275 = vrot.lane.b32.xlu0 %v1242, 32
        %v1276 = vpop.permute.xlu0 %1275
        %1277 = vrot.lane.b32.xlu0 %v1243, 32
        %v1278 = vpop.permute.xlu0 %1277
        %1279 = vrot.lane.b32.xlu0 %v1244, 32
        %v1280 = vpop.permute.xlu0 %1279
        %1281 = vrot.lane.b32.xlu0 %v1245, 32
        %v1282 = vpop.permute.xlu0 %1281
        %1283 = vrot.lane.b32.xlu0 %v1246, 32
        %v1284 = vpop.permute.xlu0 %1283
        %1285 = vrot.lane.b32.xlu0 %v1247, 32
        %v1286 = vpop.permute.xlu0 %1285
        %1287 = vrot.lane.b32.xlu0 %v1248, 32
        %v1288 = vpop.permute.xlu0 %1287
        %1289 = vrot.lane.b32.xlu0 %v1249, 32
        %v1290 = vpop.permute.xlu0 %1289
        %1291 = vrot.lane.b32.xlu0 %v1250, 32
        %v1292 = vpop.permute.xlu0 %1291
        %1293 = vrot.lane.b32.xlu0 %v1251, 32
        %v1294 = vpop.permute.xlu0 %1293
        %1295 = vrot.lane.b32.xlu0 %v1252, 32
        %v1296 = vpop.permute.xlu0 %1295
        %1297 = vrot.lane.b32.xlu0 %v1253, 32
        %v1298 = vpop.permute.xlu0 %1297
        %1299 = vrot.lane.b32.xlu0 %v1254, 32
        %v1300 = vpop.permute.xlu0 %1299
        %1301 = vrot.lane.b32.xlu0 %v1255, 32
        %v1302 = vpop.permute.xlu0 %1301
        %1303 = vrot.lane.b32.xlu0 %v1256, 32
        %v1304 = vpop.permute.xlu0 %1303
        %v1321 = vadd.f32 %v1161, %v1274
        %v1322 = vadd.f32 %v1162, %v1276
        %v1323 = vadd.f32 %v1163, %v1278
        %v1324 = vadd.f32 %v1164, %v1280
        %v1325 = vadd.f32 %v1165, %v1282
        %v1326 = vadd.f32 %v1166, %v1284
        %v1327 = vadd.f32 %v1167, %v1286
        %v1328 = vadd.f32 %v1168, %v1288
        %v1329 = vadd.f32 %v1169, %v1290
        %v1330 = vadd.f32 %v1170, %v1292
        %v1331 = vadd.f32 %v1171, %v1294
        %v1332 = vadd.f32 %v1172, %v1296
        %v1333 = vadd.f32 %v1173, %v1298
        %v1334 = vadd.f32 %v1174, %v1300
        %v1335 = vadd.f32 %v1175, %v1302
        %v1336 = vadd.f32 %v1176, %v1304
        %v1337 = vtanh.pop %v1321
        %v1338 = vtanh.pop %v1322
        %v1339 = vtanh.pop %v1323
        %v1340 = vtanh.pop %v1324
        %v1341 = vtanh.pop %v1325
        %v1342 = vtanh.pop %v1326
        %v1343 = vtanh.pop %v1327
        %v1344 = vtanh.pop %v1328
        %v1345 = vtanh.pop %v1329
        %v1346 = vtanh.pop %v1330
        %v1347 = vtanh.pop %v1331
        %v1348 = vtanh.pop %v1332
        %v1349 = vtanh.pop %v1333
        %v1350 = vtanh.pop %v1334
        %v1351 = vtanh.pop %v1335
        %v1352 = vtanh.pop %v1336
        %1369 = vrot.lane.b32.xlu0 %v1337, 64
        %v1370 = vpop.permute.xlu0 %1369
        %1371 = vrot.lane.b32.xlu0 %v1338, 64
        %v1372 = vpop.permute.xlu0 %1371
        %1373 = vrot.lane.b32.xlu0 %v1339, 64
        %v1374 = vpop.permute.xlu0 %1373
        %1375 = vrot.lane.b32.xlu0 %v1340, 64
        %v1376 = vpop.permute.xlu0 %1375
        %1377 = vrot.lane.b32.xlu0 %v1341, 64
        %v1378 = vpop.permute.xlu0 %1377
        %1379 = vrot.lane.b32.xlu0 %v1342, 64
        %v1380 = vpop.permute.xlu0 %1379
        %1381 = vrot.lane.b32.xlu0 %v1343, 64
        %v1382 = vpop.permute.xlu0 %1381
        %1383 = vrot.lane.b32.xlu0 %v1344, 64
        %v1384 = vpop.permute.xlu0 %1383
        %1385 = vrot.lane.b32.xlu0 %v1345, 64
        %v1386 = vpop.permute.xlu0 %1385
        %1387 = vrot.lane.b32.xlu0 %v1346, 64
        %v1388 = vpop.permute.xlu0 %1387
        %1389 = vrot.lane.b32.xlu0 %v1347, 64
        %v1390 = vpop.permute.xlu0 %1389
        %1391 = vrot.lane.b32.xlu0 %v1348, 64
        %v1392 = vpop.permute.xlu0 %1391
        %1393 = vrot.lane.b32.xlu0 %v1349, 64
        %v1394 = vpop.permute.xlu0 %1393
        %1395 = vrot.lane.b32.xlu0 %v1350, 64
        %v1396 = vpop.permute.xlu0 %1395
        %1397 = vrot.lane.b32.xlu0 %v1351, 64
        %v1398 = vpop.permute.xlu0 %1397
        %1399 = vrot.lane.b32.xlu0 %v1352, 64
        %v1400 = vpop.permute.xlu0 %1399
        %v1417 = vmul.f32 %v1034, %v1370
        %v1418 = vmul.f32 %v1036, %v1372
        %v1419 = vmul.f32 %v1038, %v1374
        %v1420 = vmul.f32 %v1040, %v1376
        %v1421 = vmul.f32 %v1042, %v1378
        %v1422 = vmul.f32 %v1044, %v1380
        %v1423 = vmul.f32 %v1046, %v1382
        %v1424 = vmul.f32 %v1048, %v1384
        %v1425 = vmul.f32 %v1050, %v1386
        %v1426 = vmul.f32 %v1052, %v1388
        %v1427 = vmul.f32 %v1054, %v1390
        %v1428 = vmul.f32 %v1056, %v1392
        %v1429 = vmul.f32 %v1058, %v1394
        %v1430 = vmul.f32 %v1060, %v1396
        %v1431 = vmul.f32 %v1062, %v1398
        %v1432 = vmul.f32 %v1064, %v1400
        %v1433 = vmax.f32 %v1417, 0.0
        %v1434 = vmax.f32 %v1418, 0.0
        %v1435 = vmax.f32 %v1419, 0.0
        %v1436 = vmax.f32 %v1420, 0.0
        %v1437 = vmax.f32 %v1421, 0.0
        %v1438 = vmax.f32 %v1422, 0.0
        %v1439 = vmax.f32 %v1423, 0.0
        %v1440 = vmax.f32 %v1424, 0.0
        %v1441 = vmax.f32 %v1425, 0.0
        %v1442 = vmax.f32 %v1426, 0.0
        %v1443 = vmax.f32 %v1427, 0.0
        %v1444 = vmax.f32 %v1428, 0.0
        %v1445 = vmax.f32 %v1429, 0.0
        %v1446 = vmax.f32 %v1430, 0.0
        %v1447 = vmax.f32 %v1431, 0.0
        %v1448 = vmax.f32 %v1432, 0.0
        %v1449 = vpack.c.bf16 %v1434, %v1433
        %v1450 = vpack.c.bf16 %v1436, %v1435
        %v1451 = vpack.c.bf16 %v1438, %v1437
        %v1452 = vpack.c.bf16 %v1440, %v1439
        %v1453 = vpack.c.bf16 %v1442, %v1441
        %v1454 = vpack.c.bf16 %v1444, %v1443
        %v1455 = vpack.c.bf16 %v1446, %v1445
        %v1456 = vpack.c.bf16 %v1448, %v1447
        %v1457 = vld [vmem:[%s8] sm:$0xf]
        %v1458 = vld [vmem:[%s8 + $0x4] sm:$0xf]
        %v1459 = vld [vmem:[%s8 + $0x8] sm:$0xf]
        %v1460 = vld [vmem:[%s8 + $0xc] sm:$0xf]
        %v1461 = vld [vmem:[%s9] sm:$0x1]
        %v1463 = vlaneseq
        %v1464 = vshrl.u32 %v1463, 7
        %v1465 = vsub.s32 0, %v1464
        %v1466 = vrot.slane %v1461, %v1465
        %1476 = vrot.lane.b32.xlu0 %v1449, 32
        %v1477 = vpop.permute.xlu0 %1476
        %1478 = vrot.lane.b32.xlu0 %v1450, 32
        %v1479 = vpop.permute.xlu0 %1478
        %1480 = vrot.lane.b32.xlu0 %v1451, 32
        %v1481 = vpop.permute.xlu0 %1480
        %1482 = vrot.lane.b32.xlu0 %v1452, 32
        %v1483 = vpop.permute.xlu0 %1482
        %1484 = vrot.lane.b32.xlu0 %v1453, 32
        %v1485 = vpop.permute.xlu0 %1484
        %1486 = vrot.lane.b32.xlu0 %v1454, 32
        %v1487 = vpop.permute.xlu0 %1486
        %1488 = vrot.lane.b32.xlu0 %v1455, 32
        %v1489 = vpop.permute.xlu0 %1488
        %1490 = vrot.lane.b32.xlu0 %v1456, 32
        %v1491 = vpop.permute.xlu0 %1490
        %v1496 = vunpack.c.l.b16 %v1457
        %v1497 = vunpack.c.l.b16 %v1458
        %v1498 = vunpack.c.l.b16 %v1459
        %v1499 = vunpack.c.l.b16 %v1460
        %v1500 = vpack.c.b16 %v1497, %v1496
        %v1501 = vpack.c.b16 %v1499, %v1498
        %v1505 = vsel %vm485, %v1477, 0
        %v1508 = vsel %vm485, %v1479, 0
        %v1511 = vsel %vm485, %v1481, 0
        %v1514 = vsel %vm485, %v1483, 0
        %v1517 = vsel %vm485, %v1485, 0
        %v1520 = vsel %vm485, %v1487, 0
        %v1523 = vsel %vm485, %v1489, 0
        %v1526 = vsel %vm485, %v1491, 0
        %1528 = vmatprep.subr.bf16.mxu0 0
        %1529 = vmatpush1.bf16.msra.mxu0 0
        %1530 = vmatprep.subr.bf16.mxu0 0
        %1531 = vmatpush1.bf16.msra.mxu0 0
        %1532 = vmatprep.subr.bf16.mxu0 0
        %1533 = vmatpush1.bf16.msra.mxu0 0
        %1534 = vmatprep.subr.bf16.mxu0 0
        %1535 = vmatpush1.bf16.msra.mxu0 0
        %1536 = vmatprep.subr.bf16.mxu0 0
        %1537 = vmatpush1.bf16.msra.mxu0 0
        %1538 = vmatprep.subr.bf16.mxu0 0
        %1539 = vmatpush1.bf16.msra.mxu0 0
        %1540 = vmatprep.subr.bf16.mxu0 0
        %1541 = vmatpush1.bf16.msra.mxu0 %v1501
        %1542 = vmatprep.subr.bf16.mxu0 0
        %1543 = vmatpush1.bf16.msra.mxu0 %v1500
        %1544 = vmatprep.subr.bf16.mxu0 0
        %1545 = vmatpush2.bf16.msra.mxu0 0
        %1546 = vmatprep.subr.bf16.mxu0 0
        %1547 = vmatpush2.bf16.msra.mxu0 0
        %1548 = vmatprep.subr.bf16.mxu0 0
        %1549 = vmatpush2.bf16.msra.mxu0 0
        %1550 = vmatprep.subr.bf16.mxu0 0
        %1551 = vmatpush2.bf16.msra.mxu0 0
        %1552 = vmatprep.subr.bf16.mxu0 0
        %1553 = vmatpush2.bf16.msra.mxu0 0
        %1554 = vmatprep.subr.bf16.mxu0 0
        %1555 = vmatpush2.bf16.msra.mxu0 0
        %1556 = vmatprep.subr.bf16.mxu0 0
        %1557 = vmatpush2.bf16.msra.mxu0 0
        %1558 = vmatprep.subr.bf16.mxu0 0
        %1559 = vmatpush2.bf16.msra.mxu0 0
        %1560 = vmatprep.mubr.bf16.mxu0 0
        %1561 = vmatmul.mubr.bf16.gmra.mxu0 %v1505
        %v1562 = vpop.f32.mrf.mxu0
        %v1563 = vadd.f32 %v1466, %v1562
        %v1564 = vpop.f32.mrf.mxu0
        %v1565 = vpop.f32.mrf.mxu0
        %v1566 = vadd.f32 %v1466, %v1565
        %v1567 = vpop.f32.mrf.mxu0
        %1568 = vmatprep.mubr.bf16.mxu0 0
        %1569 = vmatmul.mubr.bf16.gmra.mxu0 %v1508
        %v1570 = vpop.f32.mrf.mxu0
        %v1571 = vadd.f32 %v1466, %v1570
        %v1572 = vpop.f32.mrf.mxu0
        %v1573 = vpop.f32.mrf.mxu0
        %v1574 = vadd.f32 %v1466, %v1573
        %v1575 = vpop.f32.mrf.mxu0
        %1576 = vmatprep.mubr.bf16.mxu0 0
        %1577 = vmatmul.mubr.bf16.gmra.mxu0 %v1511
        %v1578 = vpop.f32.mrf.mxu0
        %v1579 = vadd.f32 %v1466, %v1578
        %v1580 = vpop.f32.mrf.mxu0
        %v1581 = vpop.f32.mrf.mxu0
        %v1582 = vadd.f32 %v1466, %v1581
        %v1583 = vpop.f32.mrf.mxu0
        %1584 = vmatprep.mubr.bf16.mxu0 0
        %1585 = vmatmul.mubr.bf16.gmra.mxu0 %v1514
        %v1586 = vpop.f32.mrf.mxu0
        %v1587 = vadd.f32 %v1466, %v1586
        %v1588 = vpop.f32.mrf.mxu0
        %v1589 = vpop.f32.mrf.mxu0
        %v1590 = vadd.f32 %v1466, %v1589
        %v1591 = vpop.f32.mrf.mxu0
        %1592 = vmatprep.mubr.bf16.mxu0 0
        %1593 = vmatmul.mubr.bf16.gmra.mxu0 %v1517
        %v1594 = vpop.f32.mrf.mxu0
        %v1595 = vadd.f32 %v1466, %v1594
        %v1596 = vpop.f32.mrf.mxu0
        %v1597 = vpop.f32.mrf.mxu0
        %v1598 = vadd.f32 %v1466, %v1597
        %v1599 = vpop.f32.mrf.mxu0
        %1600 = vmatprep.mubr.bf16.mxu0 0
        %1601 = vmatmul.mubr.bf16.gmra.mxu0 %v1520
        %v1602 = vpop.f32.mrf.mxu0
        %v1603 = vadd.f32 %v1466, %v1602
        %v1604 = vpop.f32.mrf.mxu0
        %v1605 = vpop.f32.mrf.mxu0
        %v1606 = vadd.f32 %v1466, %v1605
        %v1607 = vpop.f32.mrf.mxu0
        %1608 = vmatprep.mubr.bf16.mxu0 0
        %1609 = vmatmul.mubr.bf16.gmra.mxu0 %v1523
        %v1610 = vpop.f32.mrf.mxu0
        %v1611 = vadd.f32 %v1466, %v1610
        %v1612 = vpop.f32.mrf.mxu0
        %v1613 = vpop.f32.mrf.mxu0
        %v1614 = vadd.f32 %v1466, %v1613
        %v1615 = vpop.f32.mrf.mxu0
        %1616 = vmatprep.mubr.bf16.mxu0 0
        %1617 = vmatmul.mubr.bf16.gmra.mxu0 %v1526
        %v1618 = vpop.f32.mrf.mxu0
        %v1619 = vadd.f32 %v1466, %v1618
        %v1620 = vpop.f32.mrf.mxu0
        %v1621 = vpop.f32.mrf.mxu0
        %v1622 = vadd.f32 %v1466, %v1621
        %v1623 = vpop.f32.mrf.mxu0
        %1624 = vdwg.mxu0
        %v1625 = vmax.f32 %v1563, 0.0
        %v1626 = vmax.f32 %v1566, 0.0
        %v1627 = vmax.f32 %v1571, 0.0
        %v1628 = vmax.f32 %v1574, 0.0
        %v1629 = vmax.f32 %v1579, 0.0
        %v1630 = vmax.f32 %v1582, 0.0
        %v1631 = vmax.f32 %v1587, 0.0
        %v1632 = vmax.f32 %v1590, 0.0
        %v1633 = vmax.f32 %v1595, 0.0
        %v1634 = vmax.f32 %v1598, 0.0
        %v1635 = vmax.f32 %v1603, 0.0
        %v1636 = vmax.f32 %v1606, 0.0
        %v1637 = vmax.f32 %v1611, 0.0
        %v1638 = vmax.f32 %v1614, 0.0
        %v1639 = vmax.f32 %v1619, 0.0
        %v1640 = vmax.f32 %v1622, 0.0
        %vm1641 = vcmask 130048
        %1642 = vst.msk [vmem:[%s385] sm:$0xff] %vm1641, %v1625
        %1643 = vst.msk [vmem:[%s385 + $0x8] sm:$0xff] %vm1641, %v1626
        %1644 = vst.msk [vmem:[%s385 + $0x10] sm:$0xff] %vm1641, %v1627
        %1645 = vst.msk [vmem:[%s385 + $0x18] sm:$0xff] %vm1641, %v1628
        %1646 = vst.msk [vmem:[%s385 + $0x20] sm:$0xff] %vm1641, %v1629
        %1647 = vst.msk [vmem:[%s385 + $0x28] sm:$0xff] %vm1641, %v1630
        %1648 = vst.msk [vmem:[%s385 + $0x30] sm:$0xff] %vm1641, %v1631
        %1649 = vst.msk [vmem:[%s385 + $0x38] sm:$0xff] %vm1641, %v1632
        %1650 = vst.msk [vmem:[%s385 + $0x40] sm:$0xff] %vm1641, %v1633
        %1651 = vst.msk [vmem:[%s385 + $0x48] sm:$0xff] %vm1641, %v1634
        %1652 = vst.msk [vmem:[%s385 + $0x50] sm:$0xff] %vm1641, %v1635
        %1653 = vst.msk [vmem:[%s385 + $0x58] sm:$0xff] %vm1641, %v1636
        %1654 = vst.msk [vmem:[%s385 + $0x60] sm:$0xff] %vm1641, %v1637
        %1655 = vst.msk [vmem:[%s385 + $0x68] sm:$0xff] %vm1641, %v1638
        %1656 = vst.msk [vmem:[%s385 + $0x70] sm:$0xff] %vm1641, %v1639
        %1657 = vst.msk [vmem:[%s385 + $0x78] sm:$0xff] %vm1641, %v1640
        %1674 = vrot.lane.b32.xlu0 %v1433, 48
        %v1675 = vpop.permute.xlu0 %1674
        %1676 = vrot.lane.b32.xlu0 %v1434, 48
        %v1677 = vpop.permute.xlu0 %1676
        %1678 = vrot.lane.b32.xlu0 %v1435, 48
        %v1679 = vpop.permute.xlu0 %1678
        %1680 = vrot.lane.b32.xlu0 %v1436, 48
        %v1681 = vpop.permute.xlu0 %1680
        %1682 = vrot.lane.b32.xlu0 %v1437, 48
        %v1683 = vpop.permute.xlu0 %1682
        %1684 = vrot.lane.b32.xlu0 %v1438, 48
        %v1685 = vpop.permute.xlu0 %1684
        %1686 = vrot.lane.b32.xlu0 %v1439, 48
        %v1687 = vpop.permute.xlu0 %1686
        %1688 = vrot.lane.b32.xlu0 %v1440, 48
        %v1689 = vpop.permute.xlu0 %1688
        %1690 = vrot.lane.b32.xlu0 %v1441, 48
        %v1691 = vpop.permute.xlu0 %1690
        %1692 = vrot.lane.b32.xlu0 %v1442, 48
        %v1693 = vpop.permute.xlu0 %1692
        %1694 = vrot.lane.b32.xlu0 %v1443, 48
        %v1695 = vpop.permute.xlu0 %1694
        %1696 = vrot.lane.b32.xlu0 %v1444, 48
        %v1697 = vpop.permute.xlu0 %1696
        %1698 = vrot.lane.b32.xlu0 %v1445, 48
        %v1699 = vpop.permute.xlu0 %1698
        %1700 = vrot.lane.b32.xlu0 %v1446, 48
        %v1701 = vpop.permute.xlu0 %1700
        %1702 = vrot.lane.b32.xlu0 %v1447, 48
        %v1703 = vpop.permute.xlu0 %1702
        %1704 = vrot.lane.b32.xlu0 %v1448, 48
        %v1705 = vpop.permute.xlu0 %1704
        %vm1722 = vcmask 392320
        %1723 = vst.msk [vmem:[%s385] sm:$0xff] %vm1722, %v1675
        %1724 = vst.msk [vmem:[%s385 + $0x8] sm:$0xff] %vm1722, %v1677
        %1725 = vst.msk [vmem:[%s385 + $0x10] sm:$0xff] %vm1722, %v1679
        %1726 = vst.msk [vmem:[%s385 + $0x18] sm:$0xff] %vm1722, %v1681
        %1727 = vst.msk [vmem:[%s385 + $0x20] sm:$0xff] %vm1722, %v1683
        %1728 = vst.msk [vmem:[%s385 + $0x28] sm:$0xff] %vm1722, %v1685
        %1729 = vst.msk [vmem:[%s385 + $0x30] sm:$0xff] %vm1722, %v1687
        %1730 = vst.msk [vmem:[%s385 + $0x38] sm:$0xff] %vm1722, %v1689
        %1731 = vst.msk [vmem:[%s385 + $0x40] sm:$0xff] %vm1722, %v1691
        %1732 = vst.msk [vmem:[%s385 + $0x48] sm:$0xff] %vm1722, %v1693
        %1733 = vst.msk [vmem:[%s385 + $0x50] sm:$0xff] %vm1722, %v1695
        %1734 = vst.msk [vmem:[%s385 + $0x58] sm:$0xff] %vm1722, %v1697
        %1735 = vst.msk [vmem:[%s385 + $0x60] sm:$0xff] %vm1722, %v1699
        %1736 = vst.msk [vmem:[%s385 + $0x68] sm:$0xff] %vm1722, %v1701
        %1737 = vst.msk [vmem:[%s385 + $0x70] sm:$0xff] %vm1722, %v1703
        %1738 = vst.msk [vmem:[%s385 + $0x78] sm:$0xff] %vm1722, %v1705
        %1755 = vrot.lane.b32.xlu0 %v1321, 16
        %v1756 = vpop.permute.xlu0 %1755
        %1757 = vrot.lane.b32.xlu0 %v1322, 16
        %v1758 = vpop.permute.xlu0 %1757
        %1759 = vrot.lane.b32.xlu0 %v1323, 16
        %v1760 = vpop.permute.xlu0 %1759
        %1761 = vrot.lane.b32.xlu0 %v1324, 16
        %v1762 = vpop.permute.xlu0 %1761
        %1763 = vrot.lane.b32.xlu0 %v1325, 16
        %v1764 = vpop.permute.xlu0 %1763
        %1765 = vrot.lane.b32.xlu0 %v1326, 16
        %v1766 = vpop.permute.xlu0 %1765
        %1767 = vrot.lane.b32.xlu0 %v1327, 16
        %v1768 = vpop.permute.xlu0 %1767
        %1769 = vrot.lane.b32.xlu0 %v1328, 16
        %v1770 = vpop.permute.xlu0 %1769
        %1771 = vrot.lane.b32.xlu0 %v1329, 16
        %v1772 = vpop.permute.xlu0 %1771
        %1773 = vrot.lane.b32.xlu0 %v1330, 16
        %v1774 = vpop.permute.xlu0 %1773
        %1775 = vrot.lane.b32.xlu0 %v1331, 16
        %v1776 = vpop.permute.xlu0 %1775
        %1777 = vrot.lane.b32.xlu0 %v1332, 16
        %v1778 = vpop.permute.xlu0 %1777
        %1779 = vrot.lane.b32.xlu0 %v1333, 16
        %v1780 = vpop.permute.xlu0 %1779
        %1781 = vrot.lane.b32.xlu0 %v1334, 16
        %v1782 = vpop.permute.xlu0 %1781
        %1783 = vrot.lane.b32.xlu0 %v1335, 16
        %v1784 = vpop.permute.xlu0 %1783
        %1785 = vrot.lane.b32.xlu0 %v1336, 16
        %v1786 = vpop.permute.xlu0 %1785
        %vm1803 = vcmask 654720
        %1804 = vst.msk [vmem:[%s385] sm:$0xff] %vm1803, %v1756
        %1805 = vst.msk [vmem:[%s385 + $0x8] sm:$0xff] %vm1803, %v1758
        %1806 = vst.msk [vmem:[%s385 + $0x10] sm:$0xff] %vm1803, %v1760
        %1807 = vst.msk [vmem:[%s385 + $0x18] sm:$0xff] %vm1803, %v1762
        %1808 = vst.msk [vmem:[%s385 + $0x20] sm:$0xff] %vm1803, %v1764
        %1809 = vst.msk [vmem:[%s385 + $0x28] sm:$0xff] %vm1803, %v1766
        %1810 = vst.msk [vmem:[%s385 + $0x30] sm:$0xff] %vm1803, %v1768
        %1811 = vst.msk [vmem:[%s385 + $0x38] sm:$0xff] %vm1803, %v1770
        %1812 = vst.msk [vmem:[%s385 + $0x40] sm:$0xff] %vm1803, %v1772
        %1813 = vst.msk [vmem:[%s385 + $0x48] sm:$0xff] %vm1803, %v1774
        %1814 = vst.msk [vmem:[%s385 + $0x50] sm:$0xff] %vm1803, %v1776
        %1815 = vst.msk [vmem:[%s385 + $0x58] sm:$0xff] %vm1803, %v1778
        %1816 = vst.msk [vmem:[%s385 + $0x60] sm:$0xff] %vm1803, %v1780
        %1817 = vst.msk [vmem:[%s385 + $0x68] sm:$0xff] %vm1803, %v1782
        %1818 = vst.msk [vmem:[%s385 + $0x70] sm:$0xff] %vm1803, %v1784
        %1819 = vst.msk [vmem:[%s385 + $0x78] sm:$0xff] %vm1803, %v1786
        %vm1820 = vcmask 1048192
        %1821 = vst.msk [vmem:[%s385] sm:$0xff] %vm1820, 0.0
        %1822 = vst.msk [vmem:[%s385 + $0x8] sm:$0xff] %vm1820, 0.0
        %1823 = vst.msk [vmem:[%s385 + $0x10] sm:$0xff] %vm1820, 0.0
        %1824 = vst.msk [vmem:[%s385 + $0x18] sm:$0xff] %vm1820, 0.0
        %1825 = vst.msk [vmem:[%s385 + $0x20] sm:$0xff] %vm1820, 0.0
        %1826 = vst.msk [vmem:[%s385 + $0x28] sm:$0xff] %vm1820, 0.0
        %1827 = vst.msk [vmem:[%s385 + $0x30] sm:$0xff] %vm1820, 0.0
        %1828 = vst.msk [vmem:[%s385 + $0x38] sm:$0xff] %vm1820, 0.0
        %1829 = vst.msk [vmem:[%s385 + $0x40] sm:$0xff] %vm1820, 0.0
        %1830 = vst.msk [vmem:[%s385 + $0x48] sm:$0xff] %vm1820, 0.0
        %1831 = vst.msk [vmem:[%s385 + $0x50] sm:$0xff] %vm1820, 0.0
        %1832 = vst.msk [vmem:[%s385 + $0x58] sm:$0xff] %vm1820, 0.0
        %1833 = vst.msk [vmem:[%s385 + $0x60] sm:$0xff] %vm1820, 0.0
        %1834 = vst.msk [vmem:[%s385 + $0x68] sm:$0xff] %vm1820, 0.0
        %1835 = vst.msk [vmem:[%s385 + $0x70] sm:$0xff] %vm1820, 0.0
        %1836 = vst.msk [vmem:[%s385 + $0x78] sm:$0xff] %vm1820, 0.0
        %s1837 = sand.u32 %s257, 1
        %s1838 = scalar_lea.sflag [#allocation3], %s1837
        %s1839 = sand.u32 %s257, 1
        %s1840 = smul.addr %s1839, 128
        %s1841 = scalar_lea.vmem [#allocation2], %s1840
        // Predicated region
        $region61: #{tpu_custom_call.1} parent=59 // pred_check
          %p1842 = pneg %p267
        $region62: #{tpu_custom_call.1} parent=59 // pred_check_branch
          %1844 = sbr.rel (%p1842) target = $region64
        $region63: #{tpu_custom_call.1} parent=59 // pred_region
          %s1845 = smul.u32 16, %s24
          %s1847 = ssub.s32 2048, 2048
          %1848 = vsyncadd %s1838, %s1847
          %s1849 = smul.addr %s1845, 128
          %s1850 = scalar_lea.hbm %s10, %s1849
          %s1851 = sshll.u32 %s1841, 4
          %s1852 = int_to_ptr.vmem [resolvable:$true] %s1851
          %1857 = dma.vmem_to_hbm [thread:$0]  %s1852, 2048, %s1850, %s1838, 128, 128, 8
        $region64: #{tpu_custom_call.1} parent=59 // pred_fallthru
          _
      $region60: #{tpu_custom_call.1} parent=5 // pred_fallthru
        _
      %p1858 = scmp.le.s32.totalorder 2, %s19
      // Predicated region
      $region65: #{tpu_custom_call.1} parent=5 // pred_check
        %p1859 = pneg %p1858
      $region66: #{tpu_custom_call.1} parent=5 // pred_check_branch
        %1861 = sbr.rel (%p1859) target = $region68
      $region67: #{tpu_custom_call.1} parent=5 // pred_region
        %s1862 = ssub.s32 %s19, 2
        // Predicated region
        $region69: #{tpu_custom_call.1} parent=67 // pred_check
          %p1863 = pneg %p273
        $region70: #{tpu_custom_call.1} parent=67 // pred_check_branch
          %1865 = sbr.rel (%p1863) target = $region72
        $region71: #{tpu_custom_call.1} parent=67 // pred_region
          %s1866 = sand.u32 %s258, 1
          %s1867 = scalar_lea.sflag [#allocation3], %s1866
          %s1868 = sand.u32 %s258, 1
          %s1869 = smul.addr %s1868, 128
          %s1870 = scalar_lea.vmem [#allocation2], %s1869
          %1871 = dma.done %s1867, 2048
        $region72: #{tpu_custom_call.1} parent=67 // pred_fallthru
          _
      $region68: #{tpu_custom_call.1} parent=5 // pred_fallthru
        _
    $region6: #{tpu_custom_call.1} parent=1 // loop_footer
      %s23 = sadd.s32 1, %s19
    $region7: #{tpu_custom_call.1} parent=1 // loop_footer_branch
      %18 = sbr.rel target = $region3
    $region8: #{tpu_custom_call.1} parent=1 // loop_exit
      _
    %1872 = vsyncpa [#allocation3], 1
    %s1873 = scalar_lea.sflag [#allocation3], 1
    %1874 = vsyncpa %s1873, 1

</llo_original>
